<compile_context>
chip_gen: v6e
topology: v6e:2x2x1
jax: 0.10.0
libtpu: 0.0.40
codegen_flags: <defaults>
</compile_context>

<pallas_src>
import numpy as np
import jax
import jax.numpy as jnp
from jax import lax
from jax.experimental import pallas as pl
from jax.experimental.pallas import tpu as pltpu

CHANNELS = 1
OUTPUTS_A = 4          # OUTPUTS_a is undefined in the source snippet; fixed to 4 here.
H = W = 16             # input spatial size
HV = H - 2             # 14 : conv1 'valid' output size (= BN-valid region)
HALO = 2 * W + 2       # 34 : largest lane shift needed by the conv2 im2col taps
BN_EPS = 1e-5


def _cnn_kernel(p1_ref, mask_ref, tab_ref, pool_ref,
                w1_ref, b1_ref, g_ref, be_ref,
                w2_ref, b2_ref, wl_ref, bl_ref,
                w2a_ref, b2a_ref, w3_ref, b3_ref, w4_ref, b4_ref,
                w5a_ref, w5b_ref, b5_ref,
                o_ref):
    total = p1_ref.shape[1]                  # HALO + N*H*W
    flat = total - HALO                      # N*H*W (flattened conv-output canvas)
    n = pool_ref.shape[1]
    cnt = float(n * HV * HV)                 # BatchNorm normalization count

    mask = mask_ref[...]                     # (1, HALO+flat) f32 in {0, 1}

    # ---- conv1 (1 -> 16, 3x3 valid): one MXU matmul on the lane-dense canvas ----
    h = jnp.dot(w1_ref[...], p1_ref[...], preferred_element_type=jnp.float32)
    h = jnp.maximum(h + b1_ref[...], 0.0)                    # (16, HALO+flat), relu

    # ---- BatchNorm2d(16): training-mode batch stats over valid canvas lanes,
    #      folded into a single affine pass (scale, shift) ----
    hm = h * mask
    s = jnp.sum(hm, axis=1, keepdims=True)                   # (16, 1)
    ss = jnp.sum(hm * hm, axis=1, keepdims=True)             # (16, 1)
    mean = s / cnt
    var = jnp.maximum(ss / cnt - mean * mean, 0.0)
    scale = g_ref[...] * lax.rsqrt(var + BN_EPS)
    shift = be_ref[...] - mean * scale
    # ZeroPad2d(2) + relu: relu commutes with zero padding, and the mask zeroes
    # every pad / invalid canvas lane, so this haloed value *is* the padded
    # feature map (channels-first, spatial flattened into lanes).
    he = (jnp.maximum(h * scale + shift, 0.0) * mask).astype(jnp.bfloat16)

    # ---- conv2 (16 -> 128, 3x3 valid on the padded map) as ONE matmul:
    #      im2col rows are 9 static lane-offset slices of the haloed canvas ----
    pieces = []
    for di in range(3):
        for dj in range(3):
            start = W * di + dj                              # 0 .. 34
            pieces.append(he[:, start:start + flat])         # (16, flat) bf16
    p2 = jnp.concatenate(pieces, axis=0)                     # (144, flat) bf16
    out2 = jnp.dot(w2_ref[...], p2, preferred_element_type=jnp.float32)
    out2 = jnp.maximum(out2 + b2_ref[...], 0.0)              # (128, flat), relu

    # ---- AdaptiveAvgPool2d((1,1)) as an MXU matmul with a (flat, N) matrix ----
    pooled = jnp.dot(out2, pool_ref[...], preferred_element_type=jnp.float32)  # (128, N)

    # ---- image head: Linear(128 -> 4) ----
    xh = jnp.dot(wl_ref[...], pooled, preferred_element_type=jnp.float32) + bl_ref[...]

    # ---- tabular branch: 17 -> 32 -> 16 -> 4 with relu (batch in lanes) ----
    t = jnp.maximum(jnp.dot(w2a_ref[...], tab_ref[...],
                            preferred_element_type=jnp.float32) + b2a_ref[...], 0.0)
    t = jnp.maximum(jnp.dot(w3_ref[...], t,
                            preferred_element_type=jnp.float32) + b3_ref[...], 0.0)
    t = jnp.maximum(jnp.dot(w4_ref[...], t,
                            preferred_element_type=jnp.float32) + b4_ref[...], 0.0)

    # relu(cat([x, tab], 1)) @ w5  ==  relu(x) @ w5[:4] + relu(tab) @ w5[4:]
    out = (jnp.dot(w5a_ref[...], jnp.maximum(xh, 0.0), preferred_element_type=jnp.float32)
           + jnp.dot(w5b_ref[...], jnp.maximum(t, 0.0), preferred_element_type=jnp.float32)
           + b5_ref[...])
    o_ref[...] = out.astype(o_ref.dtype)                     # (OUTPUTS_A, N)


def cnn_forward(x_nchw, tab, params):
    n = x_nchw.shape[0]
    flat = n * H * W
    x = x_nchw[:, 0, :, :].astype(jnp.float32)               # (N, 16, 16), CHANNELS == 1

    # ---- layout plumbing (pure data movement, no arithmetic) ----------------
    # conv1 im2col, transposed + flattened + left halo of 34 zero lanes:
    #   p1t[t, HALO + b*256 + i*16 + j] = x[b, i+di, j+dj]  (zero-extended)
    xz = jnp.pad(x, ((0, 0), (0, 2), (0, 2)))                 # (N, 18, 18)
    taps = [xz[:, di:di + H, dj:dj + W].reshape(flat)
            for di in range(3) for dj in range(3)]
    p1t = jnp.pad(jnp.stack(taps, axis=0), ((0, 0), (HALO, 0)))   # (9, HALO+flat)

    # validity mask: conv1 output only exists for canvas i, j < 14
    ii = (jnp.arange(flat, dtype=jnp.int32) // W) % H
    jj = jnp.arange(flat, dtype=jnp.int32) % W
    valid = ((ii < HV) & (jj < HV)).astype(jnp.float32)
    mask = jnp.pad(valid, (HALO, 0)).reshape(1, HALO + flat)  # (1, HALO+flat)

    # global-average-pool matrix: pool[f, b] = 1/(H*W) if f belongs to sample b
    pool = jnp.repeat(jnp.eye(n, dtype=jnp.float32), H * W, axis=0) / float(H * W)

    # pre-transposed / reshaped weights (kernel runs channels-first)
    w1t = params["w1"].T                                      # (16, 9)
    b1 = params["b1"].reshape(16, 1)
    gam = params["gamma"].reshape(16, 1)
    bet = params["beta"].reshape(16, 1)
    w2t = params["w2"].reshape(144, 128).T.astype(jnp.bfloat16)   # (128, 144) bf16
    b2 = params["b2"].reshape(128, 1)
    wlt = params["wl"].T                                      # (4, 128)
    bl = params["bl"].reshape(OUTPUTS_A, 1)
    w2at = params["w2a"].T                                    # (32, 17)
    b2a = params["b2a"].reshape(32, 1)
    w3t = params["w3"].T                                      # (16, 32)
    b3 = params["b3"].reshape(16, 1)
    w4t = params["w4"].T                                      # (4, 16)
    b4 = params["b4"].reshape(4, 1)
    w5at = params["w5"][0:4, :].T                             # (OUTPUTS_A, 4)
    w5bt = params["w5"][4:8, :].T                             # (OUTPUTS_A, 4)
    b5 = params["b5"].reshape(OUTPUTS_A, 1)
    tabt = tab.astype(jnp.float32).T                          # (17, N)

    # Gridless single program: training-mode BatchNorm needs whole-batch stats,
    # so the batch is not tiled (default BlockSpecs map full arrays into VMEM).
    out_t = pl.pallas_call(
        _cnn_kernel,
        out_shape=jax.ShapeDtypeStruct((OUTPUTS_A, n), jnp.float32),
        compiler_params=pltpu.CompilerParams(vmem_limit_bytes=32 * 1024 * 1024),
    )(p1t, mask, tabt, pool,
      w1t, b1, gam, bet, w2t, b2, wlt, bl,
      w2at, b2a, w3t, b3, w4t, b4, w5at, w5bt, b5)
    return out_t.T                                            # (N, OUTPUTS_A)


def init_params(key):
    ks = jax.random.split(key, 14)

    def uni(k, shape, fan_in):
        b = 1.0 / float(np.sqrt(fan_in))
        return jax.random.uniform(k, shape, jnp.float32, -b, b)

    p = {}
    p["w1"] = uni(ks[0], (9, 16), 9)              # conv1: (kh*kw, C_out), C_in=1
    p["b1"] = uni(ks[1], (1, 16), 9)
    p["gamma"] = jnp.ones((1, 16), jnp.float32)   # BatchNorm2d default init
    p["beta"] = jnp.zeros((1, 16), jnp.float32)
    p["w2"] = uni(ks[2], (9, 16, 128), 144)       # conv2: (kh*kw, C_in, C_out)
    p["b2"] = uni(ks[3], (1, 128), 144)
    p["wl"] = uni(ks[4], (128, 4), 128)           # Linear(128, 4), stored (in, out)
    p["bl"] = uni(ks[5], (1, 4), 128)
    p["w2a"] = uni(ks[6], (17, 32), 17)           # Linear(17, 32)
    p["b2a"] = uni(ks[7], (1, 32), 17)
    p["w3"] = uni(ks[8], (32, 16), 32)            # Linear(32, 16)
    p["b3"] = uni(ks[9], (1, 16), 32)
    p["w4"] = uni(ks[10], (16, 4), 16)            # Linear(16, 4)
    p["b4"] = uni(ks[11], (1, 4), 16)
    p["w5"] = uni(ks[12], (8, OUTPUTS_A), 8)      # Linear(8, OUTPUTS_a)
    p["b5"] = uni(ks[13], (1, OUTPUTS_A), 8)
    return p


def reference(x_nchw, tab, p):
    """Pure-JAX reference of the PyTorch forward (for correctness check)."""
    dn = ("NHWC", "HWIO", "NHWC")
    x = jnp.transpose(x_nchw, (0, 2, 3, 1))
    w1 = p["w1"].reshape(3, 3, 1, 16)
    y = lax.conv_general_dilated(x, w1, (1, 1), "VALID", dimension_numbers=dn)
    y = jnp.maximum(y + p["b1"].reshape(1, 1, 1, 16), 0.0)
    mean = jnp.mean(y, axis=(0, 1, 2), keepdims=True)
    var = jnp.mean((y - mean) ** 2, axis=(0, 1, 2), keepdims=True)
    y = (y - mean) / jnp.sqrt(var + BN_EPS)
    y = y * p["gamma"].reshape(1, 1, 1, 16) + p["beta"].reshape(1, 1, 1, 16)
    y = jnp.pad(y, ((0, 0), (2, 2), (2, 2), (0, 0)))
    y = jnp.maximum(y, 0.0)
    w2 = p["w2"].reshape(3, 3, 16, 128)
    y = lax.conv_general_dilated(y, w2, (1, 1), "VALID", dimension_numbers=dn)
    y = jnp.maximum(y + p["b2"].reshape(1, 1, 1, 128), 0.0)
    pooled = jnp.mean(y, axis=(1, 2))
    xh = pooled @ p["wl"] + p["bl"]
    t = jnp.maximum(tab @ p["w2a"] + p["b2a"], 0.0)
    t = jnp.maximum(t @ p["w3"] + p["b3"], 0.0)
    t = jnp.maximum(t @ p["w4"] + p["b4"], 0.0)
    c = jnp.maximum(jnp.concatenate([xh, t], axis=1), 0.0)
    return c @ p["w5"] + p["b5"]


if __name__ == "__main__":
    key = jax.random.PRNGKey(0)
    kx, kt, kp = jax.random.split(key, 3)
    N = 2
    x = jax.random.normal(kx, (N, CHANNELS, H, W), jnp.float32)
    tab = jax.random.normal(kt, (N, 17), jnp.float32)
    params = init_params(kp)

    out = jax.block_until_ready(cnn_forward(x, tab, params))
    ref = jax.block_until_ready(reference(x, tab, params))

    assert out.shape == (N, OUTPUTS_A)
    # conv2 MXU operands are bf16 (f32 accumulation); comfortably inside 1e-2.
    np.testing.assert_allclose(np.asarray(out), np.asarray(ref), rtol=1e-2, atol=1e-2)
    print("KERNEL_OK")
</pallas_src>

<mosaic_0001>
module attributes {stable_mosaic.version = 11 : i64} {
  func.func @_cnn_kernel(%arg0: memref<9x546xf32, #tpu.memory_space<vmem>>, %arg1: memref<1x546xf32, #tpu.memory_space<vmem>>, %arg2: memref<17x2xf32, #tpu.memory_space<vmem>>, %arg3: memref<512x2xf32, #tpu.memory_space<vmem>>, %arg4: memref<16x9xf32, #tpu.memory_space<vmem>>, %arg5: memref<16x1xf32, #tpu.memory_space<vmem>>, %arg6: memref<16x1xf32, #tpu.memory_space<vmem>>, %arg7: memref<16x1xf32, #tpu.memory_space<vmem>>, %arg8: memref<128x144xbf16, #tpu.memory_space<vmem>>, %arg9: memref<128x1xf32, #tpu.memory_space<vmem>>, %arg10: memref<4x128xf32, #tpu.memory_space<vmem>>, %arg11: memref<4x1xf32, #tpu.memory_space<vmem>>, %arg12: memref<32x17xf32, #tpu.memory_space<vmem>>, %arg13: memref<32x1xf32, #tpu.memory_space<vmem>>, %arg14: memref<16x32xf32, #tpu.memory_space<vmem>>, %arg15: memref<16x1xf32, #tpu.memory_space<vmem>>, %arg16: memref<4x16xf32, #tpu.memory_space<vmem>>, %arg17: memref<4x1xf32, #tpu.memory_space<vmem>>, %arg18: memref<4x4xf32, #tpu.memory_space<vmem>>, %arg19: memref<4x4xf32, #tpu.memory_space<vmem>>, %arg20: memref<4x1xf32, #tpu.memory_space<vmem>>, %arg21: memref<4x2xf32, #tpu.memory_space<vmem>>) attributes {dimension_semantics = [], scalar_prefetch = 0 : i64, scratch_operands = 0 : i64, tpu.core_type = #tpu.core_type<tc>} {
    %c0 = arith.constant 0 : index
    %c0_0 = arith.constant 0 : index
    %0 = vector.load %arg1[%c0, %c0_0] : memref<1x546xf32, #tpu.memory_space<vmem>>, vector<1x546xf32>
    %c0_1 = arith.constant 0 : index
    %c0_2 = arith.constant 0 : index
    %1 = vector.load %arg4[%c0_1, %c0_2] : memref<16x9xf32, #tpu.memory_space<vmem>>, vector<16x9xf32>
    %c0_3 = arith.constant 0 : index
    %c0_4 = arith.constant 0 : index
    %2 = vector.load %arg0[%c0_3, %c0_4] : memref<9x546xf32, #tpu.memory_space<vmem>>, vector<9x546xf32>
    %cst = arith.constant dense<0.000000e+00> : vector<16x546xf32>
    %3 = tpu.matmul %1, %2, %cst {dimension_numbers = #tpu.dot_dimension_numbers<[1], [0], [0], [1], [0, 0, 1, 1], [], []>} : vector<16x9xf32>, vector<9x546xf32>, vector<16x546xf32> -> vector<16x546xf32>
    %c0_5 = arith.constant 0 : index
    %c0_6 = arith.constant 0 : index
    %4 = vector.load %arg5[%c0_5, %c0_6] : memref<16x1xf32, #tpu.memory_space<vmem>>, vector<16x1xf32>
    %5 = vector.broadcast %4 : vector<16x1xf32> to vector<16x546xf32>
    %6 = arith.addf %3, %5 : vector<16x546xf32>
    %cst_7 = arith.constant 0.000000e+00 : f32
    %7 = vector.broadcast %cst_7 : f32 to vector<16x546xf32>
    %8 = arith.maximumf %6, %7 : vector<16x546xf32>
    %9 = vector.broadcast %0 : vector<1x546xf32> to vector<16x546xf32>
    %10 = arith.mulf %8, %9 : vector<16x546xf32>
    %cst_8 = arith.constant dense<0.000000e+00> : vector<16xf32>
    %11 = vector.multi_reduction <add>, %10, %cst_8 [1] : vector<16x546xf32> to vector<16xf32>
    %12 = vector.shape_cast %11 : vector<16xf32> to vector<16x1xf32>
    %13 = arith.mulf %10, %10 : vector<16x546xf32>
    %cst_9 = arith.constant dense<0.000000e+00> : vector<16xf32>
    %14 = vector.multi_reduction <add>, %13, %cst_9 [1] : vector<16x546xf32> to vector<16xf32>
    %15 = vector.shape_cast %14 : vector<16xf32> to vector<16x1xf32>
    %cst_10 = arith.constant 3.920000e+02 : f32
    %16 = vector.broadcast %cst_10 : f32 to vector<16x1xf32>
    %17 = arith.divf %12, %16 : vector<16x1xf32>
    %cst_11 = arith.constant 3.920000e+02 : f32
    %18 = vector.broadcast %cst_11 : f32 to vector<16x1xf32>
    %19 = arith.divf %15, %18 : vector<16x1xf32>
    %20 = arith.mulf %17, %17 : vector<16x1xf32>
    %21 = arith.subf %19, %20 : vector<16x1xf32>
    %cst_12 = arith.constant 0.000000e+00 : f32
    %22 = vector.broadcast %cst_12 : f32 to vector<16x1xf32>
    %23 = arith.maximumf %21, %22 : vector<16x1xf32>
    %c0_13 = arith.constant 0 : index
    %c0_14 = arith.constant 0 : index
    %24 = vector.load %arg6[%c0_13, %c0_14] : memref<16x1xf32, #tpu.memory_space<vmem>>, vector<16x1xf32>
    %cst_15 = arith.constant 9.99999974E-6 : f32
    %25 = vector.broadcast %cst_15 : f32 to vector<16x1xf32>
    %26 = arith.addf %23, %25 : vector<16x1xf32>
    %27 = math.rsqrt %26 : vector<16x1xf32>
    %28 = arith.mulf %24, %27 : vector<16x1xf32>
    %c0_16 = arith.constant 0 : index
    %c0_17 = arith.constant 0 : index
    %29 = vector.load %arg7[%c0_16, %c0_17] : memref<16x1xf32, #tpu.memory_space<vmem>>, vector<16x1xf32>
    %30 = arith.mulf %17, %28 : vector<16x1xf32>
    %31 = arith.subf %29, %30 : vector<16x1xf32>
    %32 = vector.broadcast %28 : vector<16x1xf32> to vector<16x546xf32>
    %33 = arith.mulf %8, %32 : vector<16x546xf32>
    %34 = vector.broadcast %31 : vector<16x1xf32> to vector<16x546xf32>
    %35 = arith.addf %33, %34 : vector<16x546xf32>
    %cst_18 = arith.constant 0.000000e+00 : f32
    %36 = vector.broadcast %cst_18 : f32 to vector<16x546xf32>
    %37 = arith.maximumf %35, %36 : vector<16x546xf32>
    %38 = vector.broadcast %0 : vector<1x546xf32> to vector<16x546xf32>
    %39 = arith.mulf %37, %38 : vector<16x546xf32>
    %40 = arith.truncf %39 : vector<16x546xf32> to vector<16x546xbf16>
    %41 = vector.extract_strided_slice %40 {offsets = [0, 0], sizes = [16, 512], strides = [1, 1]} : vector<16x546xbf16> to vector<16x512xbf16>
    %42 = vector.extract_strided_slice %40 {offsets = [0, 1], sizes = [16, 512], strides = [1, 1]} : vector<16x546xbf16> to vector<16x512xbf16>
    %43 = vector.extract_strided_slice %40 {offsets = [0, 2], sizes = [16, 512], strides = [1, 1]} : vector<16x546xbf16> to vector<16x512xbf16>
    %44 = vector.extract_strided_slice %40 {offsets = [0, 16], sizes = [16, 512], strides = [1, 1]} : vector<16x546xbf16> to vector<16x512xbf16>
    %45 = vector.extract_strided_slice %40 {offsets = [0, 17], sizes = [16, 512], strides = [1, 1]} : vector<16x546xbf16> to vector<16x512xbf16>
    %46 = vector.extract_strided_slice %40 {offsets = [0, 18], sizes = [16, 512], strides = [1, 1]} : vector<16x546xbf16> to vector<16x512xbf16>
    %47 = vector.extract_strided_slice %40 {offsets = [0, 32], sizes = [16, 512], strides = [1, 1]} : vector<16x546xbf16> to vector<16x512xbf16>
    %48 = vector.extract_strided_slice %40 {offsets = [0, 33], sizes = [16, 512], strides = [1, 1]} : vector<16x546xbf16> to vector<16x512xbf16>
    %49 = vector.extract_strided_slice %40 {offsets = [0, 34], sizes = [16, 512], strides = [1, 1]} : vector<16x546xbf16> to vector<16x512xbf16>
    %50 = tpu.concatenate %41, %42, %43, %44, %45, %46, %47, %48, %49 in 0 : vector<16x512xbf16>, vector<16x512xbf16>, vector<16x512xbf16>, vector<16x512xbf16>, vector<16x512xbf16>, vector<16x512xbf16>, vector<16x512xbf16>, vector<16x512xbf16>, vector<16x512xbf16> -> vector<144x512xbf16>
    %c0_19 = arith.constant 0 : index
    %c0_20 = arith.constant 0 : index
    %51 = vector.load %arg8[%c0_19, %c0_20] : memref<128x144xbf16, #tpu.memory_space<vmem>>, vector<128x144xbf16>
    %cst_21 = arith.constant dense<0.000000e+00> : vector<128x512xf32>
    %52 = tpu.matmul %51, %50, %cst_21 {dimension_numbers = #tpu.dot_dimension_numbers<[1], [0], [0], [1], [0, 0, 1, 1], [], []>} : vector<128x144xbf16>, vector<144x512xbf16>, vector<128x512xf32> -> vector<128x512xf32>
    %c0_22 = arith.constant 0 : index
    %c0_23 = arith.constant 0 : index
    %53 = vector.load %arg9[%c0_22, %c0_23] : memref<128x1xf32, #tpu.memory_space<vmem>>, vector<128x1xf32>
    %54 = vector.broadcast %53 : vector<128x1xf32> to vector<128x512xf32>
    %55 = arith.addf %52, %54 : vector<128x512xf32>
    %cst_24 = arith.constant 0.000000e+00 : f32
    %56 = vector.broadcast %cst_24 : f32 to vector<128x512xf32>
    %57 = arith.maximumf %55, %56 : vector<128x512xf32>
    %c0_25 = arith.constant 0 : index
    %c0_26 = arith.constant 0 : index
    %58 = vector.load %arg3[%c0_25, %c0_26] : memref<512x2xf32, #tpu.memory_space<vmem>>, vector<512x2xf32>
    %cst_27 = arith.constant dense<0.000000e+00> : vector<128x2xf32>
    %59 = tpu.matmul %57, %58, %cst_27 {dimension_numbers = #tpu.dot_dimension_numbers<[1], [0], [0], [1], [0, 0, 1, 1], [], []>} : vector<128x512xf32>, vector<512x2xf32>, vector<128x2xf32> -> vector<128x2xf32>
    %c0_28 = arith.constant 0 : index
    %c0_29 = arith.constant 0 : index
    %60 = vector.load %arg10[%c0_28, %c0_29] : memref<4x128xf32, #tpu.memory_space<vmem>>, vector<4x128xf32>
    %cst_30 = arith.constant dense<0.000000e+00> : vector<4x2xf32>
    %61 = tpu.matmul %60, %59, %cst_30 {dimension_numbers = #tpu.dot_dimension_numbers<[1], [0], [0], [1], [0, 0, 1, 1], [], []>} : vector<4x128xf32>, vector<128x2xf32>, vector<4x2xf32> -> vector<4x2xf32>
    %c0_31 = arith.constant 0 : index
    %c0_32 = arith.constant 0 : index
    %62 = vector.load %arg11[%c0_31, %c0_32] : memref<4x1xf32, #tpu.memory_space<vmem>>, vector<4x1xf32>
    %63 = vector.broadcast %62 : vector<4x1xf32> to vector<4x2xf32>
    %64 = arith.addf %61, %63 : vector<4x2xf32>
    %c0_33 = arith.constant 0 : index
    %c0_34 = arith.constant 0 : index
    %65 = vector.load %arg12[%c0_33, %c0_34] : memref<32x17xf32, #tpu.memory_space<vmem>>, vector<32x17xf32>
    %c0_35 = arith.constant 0 : index
    %c0_36 = arith.constant 0 : index
    %66 = vector.load %arg2[%c0_35, %c0_36] : memref<17x2xf32, #tpu.memory_space<vmem>>, vector<17x2xf32>
    %cst_37 = arith.constant dense<0.000000e+00> : vector<32x2xf32>
    %67 = tpu.matmul %65, %66, %cst_37 {dimension_numbers = #tpu.dot_dimension_numbers<[1], [0], [0], [1], [0, 0, 1, 1], [], []>} : vector<32x17xf32>, vector<17x2xf32>, vector<32x2xf32> -> vector<32x2xf32>
    %c0_38 = arith.constant 0 : index
    %c0_39 = arith.constant 0 : index
    %68 = vector.load %arg13[%c0_38, %c0_39] : memref<32x1xf32, #tpu.memory_space<vmem>>, vector<32x1xf32>
    %69 = vector.broadcast %68 : vector<32x1xf32> to vector<32x2xf32>
    %70 = arith.addf %67, %69 : vector<32x2xf32>
    %cst_40 = arith.constant 0.000000e+00 : f32
    %71 = vector.broadcast %cst_40 : f32 to vector<32x2xf32>
    %72 = arith.maximumf %70, %71 : vector<32x2xf32>
    %c0_41 = arith.constant 0 : index
    %c0_42 = arith.constant 0 : index
    %73 = vector.load %arg14[%c0_41, %c0_42] : memref<16x32xf32, #tpu.memory_space<vmem>>, vector<16x32xf32>
    %cst_43 = arith.constant dense<0.000000e+00> : vector<16x2xf32>
    %74 = tpu.matmul %73, %72, %cst_43 {dimension_numbers = #tpu.dot_dimension_numbers<[1], [0], [0], [1], [0, 0, 1, 1], [], []>} : vector<16x32xf32>, vector<32x2xf32>, vector<16x2xf32> -> vector<16x2xf32>
    %c0_44 = arith.constant 0 : index
    %c0_45 = arith.constant 0 : index
    %75 = vector.load %arg15[%c0_44, %c0_45] : memref<16x1xf32, #tpu.memory_space<vmem>>, vector<16x1xf32>
    %76 = vector.broadcast %75 : vector<16x1xf32> to vector<16x2xf32>
    %77 = arith.addf %74, %76 : vector<16x2xf32>
    %cst_46 = arith.constant 0.000000e+00 : f32
    %78 = vector.broadcast %cst_46 : f32 to vector<16x2xf32>
    %79 = arith.maximumf %77, %78 : vector<16x2xf32>
    %c0_47 = arith.constant 0 : index
    %c0_48 = arith.constant 0 : index
    %80 = vector.load %arg16[%c0_47, %c0_48] : memref<4x16xf32, #tpu.memory_space<vmem>>, vector<4x16xf32>
    %cst_49 = arith.constant dense<0.000000e+00> : vector<4x2xf32>
    %81 = tpu.matmul %80, %79, %cst_49 {dimension_numbers = #tpu.dot_dimension_numbers<[1], [0], [0], [1], [0, 0, 1, 1], [], []>} : vector<4x16xf32>, vector<16x2xf32>, vector<4x2xf32> -> vector<4x2xf32>
    %c0_50 = arith.constant 0 : index
    %c0_51 = arith.constant 0 : index
    %82 = vector.load %arg17[%c0_50, %c0_51] : memref<4x1xf32, #tpu.memory_space<vmem>>, vector<4x1xf32>
    %83 = vector.broadcast %82 : vector<4x1xf32> to vector<4x2xf32>
    %84 = arith.addf %81, %83 : vector<4x2xf32>
    %cst_52 = arith.constant 0.000000e+00 : f32
    %85 = vector.broadcast %cst_52 : f32 to vector<4x2xf32>
    %86 = arith.maximumf %84, %85 : vector<4x2xf32>
    %c0_53 = arith.constant 0 : index
    %c0_54 = arith.constant 0 : index
    %87 = vector.load %arg18[%c0_53, %c0_54] : memref<4x4xf32, #tpu.memory_space<vmem>>, vector<4x4xf32>
    %cst_55 = arith.constant 0.000000e+00 : f32
    %88 = vector.broadcast %cst_55 : f32 to vector<4x2xf32>
    %89 = arith.maximumf %64, %88 : vector<4x2xf32>
    %cst_56 = arith.constant dense<0.000000e+00> : vector<4x2xf32>
    %90 = tpu.matmul %87, %89, %cst_56 {dimension_numbers = #tpu.dot_dimension_numbers<[1], [0], [0], [1], [0, 0, 1, 1], [], []>} : vector<4x4xf32>, vector<4x2xf32>, vector<4x2xf32> -> vector<4x2xf32>
    %c0_57 = arith.constant 0 : index
    %c0_58 = arith.constant 0 : index
    %91 = vector.load %arg19[%c0_57, %c0_58] : memref<4x4xf32, #tpu.memory_space<vmem>>, vector<4x4xf32>
    %cst_59 = arith.constant 0.000000e+00 : f32
    %92 = vector.broadcast %cst_59 : f32 to vector<4x2xf32>
    %93 = arith.maximumf %86, %92 : vector<4x2xf32>
    %cst_60 = arith.constant dense<0.000000e+00> : vector<4x2xf32>
    %94 = tpu.matmul %91, %93, %cst_60 {dimension_numbers = #tpu.dot_dimension_numbers<[1], [0], [0], [1], [0, 0, 1, 1], [], []>} : vector<4x4xf32>, vector<4x2xf32>, vector<4x2xf32> -> vector<4x2xf32>
    %95 = arith.addf %90, %94 : vector<4x2xf32>
    %c0_61 = arith.constant 0 : index
    %c0_62 = arith.constant 0 : index
    %96 = vector.load %arg20[%c0_61, %c0_62] : memref<4x1xf32, #tpu.memory_space<vmem>>, vector<4x1xf32>
    %97 = vector.broadcast %96 : vector<4x1xf32> to vector<4x2xf32>
    %98 = arith.addf %95, %97 : vector<4x2xf32>
    %c0_63 = arith.constant 0 : index
    %c0_64 = arith.constant 0 : index
    %99 = vector.load %arg21[%c0_63, %c0_64] : memref<4x2xf32, #tpu.memory_space<vmem>>, vector<4x2xf32>
    tpu.vector_store %arg21[%c0_63, %c0_64], %98 {strides = array<i32>} : memref<4x2xf32, #tpu.memory_space<vmem>>, vector<4x2xf32>,
    return
  }
}

</mosaic_0001>

<llo_original>
// kernel: tpu_custom_call.1
$region0: #{tpu_custom_call.1}
  #allocation0 [shape = 'u32[]', space=smem, size = 0x4, offset = 0x4, fixed_abs, tag = 'smem constant byte address 0x4 - core index']
  #allocation1 [shape = 'u32[144,128]{1,0:T(1,128)}', space=vmem, size = 0x12000, scoped, tag = 'internal scratch']
  %s0 = inlined_call_operand.vmem [shape: f32[9,546], index: 0, kind: input, shape index: {}]
  %s1 = inlined_call_operand.vmem [shape: f32[1,546], index: 1, kind: input, shape index: {}]
  %s2 = inlined_call_operand.vmem [shape: f32[17,2], index: 2, kind: input, shape index: {}]
  %s3 = inlined_call_operand.vmem [shape: f32[512,2], index: 3, kind: input, shape index: {}]
  %s4 = inlined_call_operand.vmem [shape: f32[16,9], index: 4, kind: input, shape index: {}]
  %s5 = inlined_call_operand.vmem [shape: f32[16,1], index: 5, kind: input, shape index: {}]
  %s6 = inlined_call_operand.vmem [shape: f32[16,1], index: 6, kind: input, shape index: {}]
  %s7 = inlined_call_operand.vmem [shape: f32[16,1], index: 7, kind: input, shape index: {}]
  %s8 = inlined_call_operand.vmem [shape: bf16[128,144], index: 8, kind: input, shape index: {}]
  %s9 = inlined_call_operand.vmem [shape: f32[128,1], index: 9, kind: input, shape index: {}]
  %s10 = inlined_call_operand.vmem [shape: f32[4,128], index: 10, kind: input, shape index: {}]
  %s11 = inlined_call_operand.vmem [shape: f32[4,1], index: 11, kind: input, shape index: {}]
  %s12 = inlined_call_operand.vmem [shape: f32[32,17], index: 12, kind: input, shape index: {}]
  %s13 = inlined_call_operand.vmem [shape: f32[32,1], index: 13, kind: input, shape index: {}]
  %s14 = inlined_call_operand.vmem [shape: f32[16,32], index: 14, kind: input, shape index: {}]
  %s15 = inlined_call_operand.vmem [shape: f32[16,1], index: 15, kind: input, shape index: {}]
  %s16 = inlined_call_operand.vmem [shape: f32[4,16], index: 16, kind: input, shape index: {}]
  %s17 = inlined_call_operand.vmem [shape: f32[4,1], index: 17, kind: input, shape index: {}]
  %s18 = inlined_call_operand.vmem [shape: f32[4,4], index: 18, kind: input, shape index: {}]
  %s19 = inlined_call_operand.vmem [shape: f32[4,4], index: 19, kind: input, shape index: {}]
  %s20 = inlined_call_operand.vmem [shape: f32[4,1], index: 20, kind: input, shape index: {}]
  %s21 = inlined_call_operand.vmem [shape: f32[4,2], index: 21, kind: output, shape index: {}]
  %s22 = sld [smem:[#allocation0]]
  $region94: #{tpu_custom_call.1} parent=0
    _
  %s24 = ssub.s32 1, %s22
  %s25 = scalar_select 0, %s24, %s22
  // Predicated region
  $region2: #{tpu_custom_call.1} parent=0 // pred_check
    _
  $region3: #{tpu_custom_call.1} parent=0 // pred_check_branch
    %27 = sbr.rel (0) target = $region5
  $region4: #{tpu_custom_call.1} parent=0 // pred_region
    _
  $region5: #{tpu_custom_call.1} parent=0 // pred_fallthru
    _
  // Predicated region
  $region6: #{tpu_custom_call.1} parent=0 // pred_check
    _
  $region7: #{tpu_custom_call.1} parent=0 // pred_check_branch
    %29 = sbr.rel (0) target = $region9
  $region8: #{tpu_custom_call.1} parent=0 // pred_region
    _
  $region9: #{tpu_custom_call.1} parent=0 // pred_fallthru
    _
  // Predicated region
  $region10: #{tpu_custom_call.1} parent=0 // pred_check
    _
  $region11: #{tpu_custom_call.1} parent=0 // pred_check_branch
    %31 = sbr.rel (0) target = $region13
  $region12: #{tpu_custom_call.1} parent=0 // pred_region
    _
  $region13: #{tpu_custom_call.1} parent=0 // pred_fallthru
    _
  // Predicated region
  $region14: #{tpu_custom_call.1} parent=0 // pred_check
    _
  $region15: #{tpu_custom_call.1} parent=0 // pred_check_branch
    %33 = sbr.rel (0) target = $region17
  $region16: #{tpu_custom_call.1} parent=0 // pred_region
    _
  $region17: #{tpu_custom_call.1} parent=0 // pred_fallthru
    _
  // Predicated region
  $region18: #{tpu_custom_call.1} parent=0 // pred_check
    _
  $region19: #{tpu_custom_call.1} parent=0 // pred_check_branch
    %35 = sbr.rel (0) target = $region21
  $region20: #{tpu_custom_call.1} parent=0 // pred_region
    _
  $region21: #{tpu_custom_call.1} parent=0 // pred_fallthru
    _
  // Predicated region
  $region22: #{tpu_custom_call.1} parent=0 // pred_check
    _
  $region23: #{tpu_custom_call.1} parent=0 // pred_check_branch
    %37 = sbr.rel (0) target = $region25
  $region24: #{tpu_custom_call.1} parent=0 // pred_region
    _
  $region25: #{tpu_custom_call.1} parent=0 // pred_fallthru
    _
  // Predicated region
  $region26: #{tpu_custom_call.1} parent=0 // pred_check
    _
  $region27: #{tpu_custom_call.1} parent=0 // pred_check_branch
    %39 = sbr.rel (0) target = $region29
  $region28: #{tpu_custom_call.1} parent=0 // pred_region
    _
  $region29: #{tpu_custom_call.1} parent=0 // pred_fallthru
    _
  // Predicated region
  $region30: #{tpu_custom_call.1} parent=0 // pred_check
    _
  $region31: #{tpu_custom_call.1} parent=0 // pred_check_branch
    %41 = sbr.rel (0) target = $region33
  $region32: #{tpu_custom_call.1} parent=0 // pred_region
    _
  $region33: #{tpu_custom_call.1} parent=0 // pred_fallthru
    _
  // Predicated region
  $region34: #{tpu_custom_call.1} parent=0 // pred_check
    _
  $region35: #{tpu_custom_call.1} parent=0 // pred_check_branch
    %43 = sbr.rel (0) target = $region37
  $region36: #{tpu_custom_call.1} parent=0 // pred_region
    _
  $region37: #{tpu_custom_call.1} parent=0 // pred_fallthru
    _
  // Predicated region
  $region38: #{tpu_custom_call.1} parent=0 // pred_check
    _
  $region39: #{tpu_custom_call.1} parent=0 // pred_check_branch
    %45 = sbr.rel (0) target = $region41
  $region40: #{tpu_custom_call.1} parent=0 // pred_region
    _
  $region41: #{tpu_custom_call.1} parent=0 // pred_fallthru
    _
  // Predicated region
  $region42: #{tpu_custom_call.1} parent=0 // pred_check
    _
  $region43: #{tpu_custom_call.1} parent=0 // pred_check_branch
    %47 = sbr.rel (0) target = $region45
  $region44: #{tpu_custom_call.1} parent=0 // pred_region
    _
  $region45: #{tpu_custom_call.1} parent=0 // pred_fallthru
    _
  // Predicated region
  $region46: #{tpu_custom_call.1} parent=0 // pred_check
    _
  $region47: #{tpu_custom_call.1} parent=0 // pred_check_branch
    %49 = sbr.rel (0) target = $region49
  $region48: #{tpu_custom_call.1} parent=0 // pred_region
    _
  $region49: #{tpu_custom_call.1} parent=0 // pred_fallthru
    _
  // Predicated region
  $region50: #{tpu_custom_call.1} parent=0 // pred_check
    _
  $region51: #{tpu_custom_call.1} parent=0 // pred_check_branch
    %51 = sbr.rel (0) target = $region53
  $region52: #{tpu_custom_call.1} parent=0 // pred_region
    _
  $region53: #{tpu_custom_call.1} parent=0 // pred_fallthru
    _
  // Predicated region
  $region54: #{tpu_custom_call.1} parent=0 // pred_check
    _
  $region55: #{tpu_custom_call.1} parent=0 // pred_check_branch
    %53 = sbr.rel (0) target = $region57
  $region56: #{tpu_custom_call.1} parent=0 // pred_region
    _
  $region57: #{tpu_custom_call.1} parent=0 // pred_fallthru
    _
  // Predicated region
  $region58: #{tpu_custom_call.1} parent=0 // pred_check
    _
  $region59: #{tpu_custom_call.1} parent=0 // pred_check_branch
    %55 = sbr.rel (0) target = $region61
  $region60: #{tpu_custom_call.1} parent=0 // pred_region
    _
  $region61: #{tpu_custom_call.1} parent=0 // pred_fallthru
    _
  // Predicated region
  $region62: #{tpu_custom_call.1} parent=0 // pred_check
    _
  $region63: #{tpu_custom_call.1} parent=0 // pred_check_branch
    %57 = sbr.rel (0) target = $region65
  $region64: #{tpu_custom_call.1} parent=0 // pred_region
    _
  $region65: #{tpu_custom_call.1} parent=0 // pred_fallthru
    _
  // Predicated region
  $region66: #{tpu_custom_call.1} parent=0 // pred_check
    _
  $region67: #{tpu_custom_call.1} parent=0 // pred_check_branch
    %59 = sbr.rel (0) target = $region69
  $region68: #{tpu_custom_call.1} parent=0 // pred_region
    _
  $region69: #{tpu_custom_call.1} parent=0 // pred_fallthru
    _
  // Predicated region
  $region70: #{tpu_custom_call.1} parent=0 // pred_check
    _
  $region71: #{tpu_custom_call.1} parent=0 // pred_check_branch
    %61 = sbr.rel (0) target = $region73
  $region72: #{tpu_custom_call.1} parent=0 // pred_region
    _
  $region73: #{tpu_custom_call.1} parent=0 // pred_fallthru
    _
  // Predicated region
  $region74: #{tpu_custom_call.1} parent=0 // pred_check
    _
  $region75: #{tpu_custom_call.1} parent=0 // pred_check_branch
    %63 = sbr.rel (0) target = $region77
  $region76: #{tpu_custom_call.1} parent=0 // pred_region
    _
  $region77: #{tpu_custom_call.1} parent=0 // pred_fallthru
    _
  // Predicated region
  $region78: #{tpu_custom_call.1} parent=0 // pred_check
    _
  $region79: #{tpu_custom_call.1} parent=0 // pred_check_branch
    %65 = sbr.rel (0) target = $region81
  $region80: #{tpu_custom_call.1} parent=0 // pred_region
    _
  $region81: #{tpu_custom_call.1} parent=0 // pred_fallthru
    _
  // Predicated region
  $region82: #{tpu_custom_call.1} parent=0 // pred_check
    _
  $region83: #{tpu_custom_call.1} parent=0 // pred_check_branch
    %67 = sbr.rel (0) target = $region85
  $region84: #{tpu_custom_call.1} parent=0 // pred_region
    _
  $region85: #{tpu_custom_call.1} parent=0 // pred_fallthru
    _
  %v69 = vld [vmem:[%s1] sm:$0x1f]
  %v70 = vld [vmem:[%s4] sm:$0xff]
  %v71 = vld [vmem:[%s4 + $0x8] sm:$0xff]
  %v72 = vld [vmem:[%s0] sm:$0xff]
  %v73 = vld [vmem:[%s0 + $0x8] sm:$0xff]
  %v74 = vld [vmem:[%s0 + $0x10] sm:$0xff]
  %v75 = vld [vmem:[%s0 + $0x18] sm:$0xff]
  %v76 = vld [vmem:[%s0 + $0x20] sm:$0xff]
  %v77 = vld [vmem:[%s0 + $0x28] sm:$0x1]
  %v78 = vld [vmem:[%s0 + $0x30] sm:$0x1]
  %v79 = vld [vmem:[%s0 + $0x38] sm:$0x1]
  %v80 = vld [vmem:[%s0 + $0x40] sm:$0x1]
  %v81 = vld [vmem:[%s0 + $0x48] sm:$0x1]
  %v82 = vld [vmem:[%s5] sm:$0xff]
  %v83 = vld [vmem:[%s5 + $0x8] sm:$0xff]
  %85 = vset.pattern.permute.xlu0 0
  %86 = vperm.xlu0 %85, %v82
  %v87 = vpop.permute.xlu0 %86
  %90 = vset.pattern.permute.xlu0 0
  %91 = vperm.xlu0 %90, %v83
  %v92 = vpop.permute.xlu0 %91
  %vm94 = vcmask 72704
  %v96 = vsel %vm94, %v70, 0
  %v99 = vsel %vm94, %v71, 0
  %vm101 = vcmask 1040384
  %v103 = vsel %vm101, %v77, 0
  %v106 = vsel %vm101, %v78, 0
  %v109 = vsel %vm101, %v79, 0
  %v112 = vsel %vm101, %v80, 0
  %v115 = vsel %vm101, %v81, 0
  %117 = vmatprep.subr.mxu0 0.0
  %118 = vmatpush1.msra.mxu0 0.0
  %119 = vmatprep.subr.mxu0 0.0
  %120 = vmatpush1.msra.mxu0 0.0
  %121 = vmatprep.subr.mxu0 0.0
  %122 = vmatpush1.msra.mxu0 0.0
  %123 = vmatprep.subr.mxu0 0.0
  %124 = vmatpush1.msra.mxu0 0.0
  %125 = vmatprep.subr.mxu0 0.0
  %126 = vmatpush1.msra.mxu0 0.0
  %127 = vmatprep.subr.mxu0 0.0
  %128 = vmatpush1.msra.mxu0 0.0
  %129 = vmatprep.subr.mxu0 0.0
  %130 = vmatpush1.msra.mxu0 0.0
  %131 = vmatprep.subr.mxu0 0.0
  %132 = vmatpush1.msra.mxu0 0.0
  %133 = vmatprep.subr.mxu0 0.0
  %134 = vmatpush1.msra.mxu0 0.0
  %135 = vmatprep.subr.mxu0 0.0
  %136 = vmatpush1.msra.mxu0 0.0
  %137 = vmatprep.subr.mxu0 0.0
  %138 = vmatpush1.msra.mxu0 0.0
  %139 = vmatprep.subr.mxu0 0.0
  %140 = vmatpush1.msra.mxu0 0.0
  %141 = vmatprep.subr.mxu0 0.0
  %142 = vmatpush1.msra.mxu0 0.0
  %143 = vmatprep.subr.mxu0 0.0
  %144 = vmatpush1.msra.mxu0 0.0
  %145 = vmatprep.subr.mxu0 %v106
  %146 = vmatpush1.msra.mxu0 %v103
  %147 = vmatprep.subr.mxu0 %v73
  %148 = vmatpush1.msra.mxu0 %v72
  %149 = vmatprep.subr.mxu0 0.0
  %150 = vmatpush2.msra.mxu0 0.0
  %151 = vmatprep.subr.mxu0 0.0
  %152 = vmatpush2.msra.mxu0 0.0
  %153 = vmatprep.subr.mxu0 0.0
  %154 = vmatpush2.msra.mxu0 0.0
  %155 = vmatprep.subr.mxu0 0.0
  %156 = vmatpush2.msra.mxu0 0.0
  %157 = vmatprep.subr.mxu0 0.0
  %158 = vmatpush2.msra.mxu0 0.0
  %159 = vmatprep.subr.mxu0 0.0
  %160 = vmatpush2.msra.mxu0 0.0
  %161 = vmatprep.subr.mxu0 0.0
  %162 = vmatpush2.msra.mxu0 0.0
  %163 = vmatprep.subr.mxu0 0.0
  %164 = vmatpush2.msra.mxu0 0.0
  %165 = vmatprep.subr.mxu0 0.0
  %166 = vmatpush2.msra.mxu0 0.0
  %167 = vmatprep.subr.mxu0 0.0
  %168 = vmatpush2.msra.mxu0 0.0
  %169 = vmatprep.subr.mxu0 0.0
  %170 = vmatpush2.msra.mxu0 0.0
  %171 = vmatprep.subr.mxu0 0.0
  %172 = vmatpush2.msra.mxu0 0.0
  %173 = vmatprep.subr.mxu0 0.0
  %174 = vmatpush2.msra.mxu0 0.0
  %175 = vmatprep.subr.mxu0 0.0
  %176 = vmatpush2.msra.mxu0 0.0
  %177 = vmatprep.subr.mxu0 0.0
  %178 = vmatpush2.msra.mxu0 0.0
  %179 = vmatprep.subr.mxu0 0.0
  %180 = vmatpush2.msra.mxu0 0.0
  %181 = vmatprep.mubr.f32.mxu0 0.0
  %182 = vmatmul.mubr.f32.gmra.mxu0 %v96
  %v183 = vpop.f32.mrf.mxu0
  %v184 = vadd.f32 %v87, %v183
  %v185 = vpop.f32.mrf.mxu0
  %v186 = vadd.f32 %v87, %v185
  %187 = vmatprep.mubr.f32.mxu0 0.0
  %188 = vmatmul.mubr.f32.gmra.mxu0 %v99
  %v189 = vpop.f32.mrf.mxu0
  %v190 = vadd.f32 %v92, %v189
  %v191 = vpop.f32.mrf.mxu0
  %v192 = vadd.f32 %v92, %v191
  %193 = vdwg.mxu0
  %194 = vmatprep.subr.mxu0 0.0
  %195 = vmatpush1.msra.mxu0 0.0
  %196 = vmatprep.subr.mxu0 0.0
  %197 = vmatpush1.msra.mxu0 0.0
  %198 = vmatprep.subr.mxu0 0.0
  %199 = vmatpush1.msra.mxu0 0.0
  %200 = vmatprep.subr.mxu0 0.0
  %201 = vmatpush1.msra.mxu0 0.0
  %202 = vmatprep.subr.mxu0 0.0
  %203 = vmatpush1.msra.mxu0 0.0
  %204 = vmatprep.subr.mxu0 0.0
  %205 = vmatpush1.msra.mxu0 0.0
  %206 = vmatprep.subr.mxu0 0.0
  %207 = vmatpush1.msra.mxu0 0.0
  %208 = vmatprep.subr.mxu0 0.0
  %209 = vmatpush1.msra.mxu0 0.0
  %210 = vmatprep.subr.mxu0 0.0
  %211 = vmatpush1.msra.mxu0 0.0
  %212 = vmatprep.subr.mxu0 0.0
  %213 = vmatpush1.msra.mxu0 0.0
  %214 = vmatprep.subr.mxu0 0.0
  %215 = vmatpush1.msra.mxu0 0.0
  %216 = vmatprep.subr.mxu0 0.0
  %217 = vmatpush1.msra.mxu0 0.0
  %218 = vmatprep.subr.mxu0 0.0
  %219 = vmatpush1.msra.mxu0 0.0
  %220 = vmatprep.subr.mxu0 0.0
  %221 = vmatpush1.msra.mxu0 0.0
  %222 = vmatprep.subr.mxu0 %v112
  %223 = vmatpush1.msra.mxu0 %v109
  %224 = vmatprep.subr.mxu0 %v75
  %225 = vmatpush1.msra.mxu0 %v74
  %226 = vmatprep.subr.mxu0 0.0
  %227 = vmatpush2.msra.mxu0 0.0
  %228 = vmatprep.subr.mxu0 0.0
  %229 = vmatpush2.msra.mxu0 0.0
  %230 = vmatprep.subr.mxu0 0.0
  %231 = vmatpush2.msra.mxu0 0.0
  %232 = vmatprep.subr.mxu0 0.0
  %233 = vmatpush2.msra.mxu0 0.0
  %234 = vmatprep.subr.mxu0 0.0
  %235 = vmatpush2.msra.mxu0 0.0
  %236 = vmatprep.subr.mxu0 0.0
  %237 = vmatpush2.msra.mxu0 0.0
  %238 = vmatprep.subr.mxu0 0.0
  %239 = vmatpush2.msra.mxu0 0.0
  %240 = vmatprep.subr.mxu0 0.0
  %241 = vmatpush2.msra.mxu0 0.0
  %242 = vmatprep.subr.mxu0 0.0
  %243 = vmatpush2.msra.mxu0 0.0
  %244 = vmatprep.subr.mxu0 0.0
  %245 = vmatpush2.msra.mxu0 0.0
  %246 = vmatprep.subr.mxu0 0.0
  %247 = vmatpush2.msra.mxu0 0.0
  %248 = vmatprep.subr.mxu0 0.0
  %249 = vmatpush2.msra.mxu0 0.0
  %250 = vmatprep.subr.mxu0 0.0
  %251 = vmatpush2.msra.mxu0 0.0
  %252 = vmatprep.subr.mxu0 0.0
  %253 = vmatpush2.msra.mxu0 0.0
  %254 = vmatprep.subr.mxu0 0.0
  %255 = vmatpush2.msra.mxu0 0.0
  %256 = vmatprep.subr.mxu0 0.0
  %257 = vmatpush2.msra.mxu0 0.0
  %258 = vmatprep.mubr.f32.mxu0 0.0
  %259 = vmatmul.mubr.f32.gmra.mxu0 %v96
  %v260 = vpop.f32.mrf.mxu0
  %v261 = vadd.f32 %v87, %v260
  %v262 = vpop.f32.mrf.mxu0
  %v263 = vadd.f32 %v87, %v262
  %264 = vmatprep.mubr.f32.mxu0 0.0
  %265 = vmatmul.mubr.f32.gmra.mxu0 %v99
  %v266 = vpop.f32.mrf.mxu0
  %v267 = vadd.f32 %v92, %v266
  %v268 = vpop.f32.mrf.mxu0
  %v269 = vadd.f32 %v92, %v268
  %270 = vdwg.mxu0
  %271 = vmatprep.subr.mxu0 0.0
  %272 = vmatpush1.msra.mxu0 0.0
  %273 = vmatprep.subr.mxu0 0.0
  %274 = vmatpush1.msra.mxu0 0.0
  %275 = vmatprep.subr.mxu0 0.0
  %276 = vmatpush1.msra.mxu0 0.0
  %277 = vmatprep.subr.mxu0 0.0
  %278 = vmatpush1.msra.mxu0 0.0
  %279 = vmatprep.subr.mxu0 0.0
  %280 = vmatpush1.msra.mxu0 0.0
  %281 = vmatprep.subr.mxu0 0.0
  %282 = vmatpush1.msra.mxu0 0.0
  %283 = vmatprep.subr.mxu0 0.0
  %284 = vmatpush1.msra.mxu0 0.0
  %285 = vmatprep.subr.mxu0 0.0
  %286 = vmatpush1.msra.mxu0 0.0
  %287 = vmatprep.subr.mxu0 0.0
  %288 = vmatpush1.msra.mxu0 0.0
  %289 = vmatprep.subr.mxu0 0.0
  %290 = vmatpush1.msra.mxu0 0.0
  %291 = vmatprep.subr.mxu0 0.0
  %292 = vmatpush1.msra.mxu0 0.0
  %293 = vmatprep.subr.mxu0 0.0
  %294 = vmatpush1.msra.mxu0 0.0
  %295 = vmatprep.subr.mxu0 0.0
  %296 = vmatpush1.msra.mxu0 0.0
  %297 = vmatprep.subr.mxu0 0.0
  %298 = vmatpush1.msra.mxu0 0.0
  %299 = vmatprep.subr.mxu0 0.0
  %300 = vmatpush1.msra.mxu0 %v115
  %301 = vmatprep.subr.mxu0 0.0
  %302 = vmatpush1.msra.mxu0 %v76
  %303 = vmatprep.subr.mxu0 0.0
  %304 = vmatpush2.msra.mxu0 0.0
  %305 = vmatprep.subr.mxu0 0.0
  %306 = vmatpush2.msra.mxu0 0.0
  %307 = vmatprep.subr.mxu0 0.0
  %308 = vmatpush2.msra.mxu0 0.0
  %309 = vmatprep.subr.mxu0 0.0
  %310 = vmatpush2.msra.mxu0 0.0
  %311 = vmatprep.subr.mxu0 0.0
  %312 = vmatpush2.msra.mxu0 0.0
  %313 = vmatprep.subr.mxu0 0.0
  %314 = vmatpush2.msra.mxu0 0.0
  %315 = vmatprep.subr.mxu0 0.0
  %316 = vmatpush2.msra.mxu0 0.0
  %317 = vmatprep.subr.mxu0 0.0
  %318 = vmatpush2.msra.mxu0 0.0
  %319 = vmatprep.subr.mxu0 0.0
  %320 = vmatpush2.msra.mxu0 0.0
  %321 = vmatprep.subr.mxu0 0.0
  %322 = vmatpush2.msra.mxu0 0.0
  %323 = vmatprep.subr.mxu0 0.0
  %324 = vmatpush2.msra.mxu0 0.0
  %325 = vmatprep.subr.mxu0 0.0
  %326 = vmatpush2.msra.mxu0 0.0
  %327 = vmatprep.subr.mxu0 0.0
  %328 = vmatpush2.msra.mxu0 0.0
  %329 = vmatprep.subr.mxu0 0.0
  %330 = vmatpush2.msra.mxu0 0.0
  %331 = vmatprep.subr.mxu0 0.0
  %332 = vmatpush2.msra.mxu0 0.0
  %333 = vmatprep.subr.mxu0 0.0
  %334 = vmatpush2.msra.mxu0 0.0
  %335 = vmatprep.mubr.f32.mxu0 0.0
  %336 = vmatmul.mubr.f32.gmra.mxu0 %v96
  %v337 = vpop.f32.mrf.mxu0
  %v338 = vadd.f32 %v87, %v337
  %v339 = vpop.f32.mrf.mxu0
  %340 = vmatprep.mubr.f32.mxu0 0.0
  %341 = vmatmul.mubr.f32.gmra.mxu0 %v99
  %v342 = vpop.f32.mrf.mxu0
  %v343 = vadd.f32 %v92, %v342
  %v344 = vpop.f32.mrf.mxu0
  %345 = vdwg.mxu0
  %v346 = vmax.f32 %v184, 0.0
  %v347 = vmax.f32 %v186, 0.0
  %v348 = vmax.f32 %v261, 0.0
  %v349 = vmax.f32 %v263, 0.0
  %v350 = vmax.f32 %v338, 0.0
  %v351 = vmax.f32 %v190, 0.0
  %v352 = vmax.f32 %v192, 0.0
  %v353 = vmax.f32 %v267, 0.0
  %v354 = vmax.f32 %v269, 0.0
  %v355 = vmax.f32 %v343, 0.0
  %v357 = vlaneseq
  %v358 = vshrl.u32 %v357, 7
  %v359 = vsub.s32 0, %v358
  %v360 = vrot.slane %v69, %v359
  %v361 = vlaneseq
  %v362 = vshrl.u32 %v361, 7
  %v363 = vsub.s32 1, %v362
  %v364 = vrot.slane %v69, %v363
  %v365 = vlaneseq
  %v366 = vshrl.u32 %v365, 7
  %v367 = vsub.s32 2, %v366
  %v368 = vrot.slane %v69, %v367
  %v369 = vlaneseq
  %v370 = vshrl.u32 %v369, 7
  %v371 = vsub.s32 3, %v370
  %v372 = vrot.slane %v69, %v371
  %v373 = vlaneseq
  %v374 = vshrl.u32 %v373, 7
  %v375 = vsub.s32 4, %v374
  %v376 = vrot.slane %v69, %v375
  %v382 = vmul.f32 %v346, %v360
  %v383 = vmul.f32 %v347, %v364
  %v384 = vmul.f32 %v348, %v368
  %v385 = vmul.f32 %v349, %v372
  %v386 = vmul.f32 %v350, %v376
  %v387 = vmul.f32 %v351, %v360
  %v388 = vmul.f32 %v352, %v364
  %v389 = vmul.f32 %v353, %v368
  %v390 = vmul.f32 %v354, %v372
  %v391 = vmul.f32 %v355, %v376
  %v392 = vadd.f32 %v382, %v383
  %v393 = vadd.f32 %v392, %v384
  %v394 = vadd.f32 %v393, %v385
  %vm395 = vcmask 277504
  %v396 = vsel %vm395, %v386, 0.0
  %v397 = vadd.f32 %v394, %v396
  %398 = vadd.xlane.f32.xlu0 %v397
  %v399 = vpop.xlane.xlu0 %398
  %v400 = vadd.f32 %v387, %v388
  %v401 = vadd.f32 %v400, %v389
  %v402 = vadd.f32 %v401, %v390
  %v403 = vsel %vm395, %v391, 0.0
  %v404 = vadd.f32 %v402, %v403
  %405 = vadd.xlane.f32.xlu0 %v404
  %v406 = vpop.xlane.xlu0 %405
  %v407 = vmul.f32 %v382, %v382
  %v408 = vmul.f32 %v383, %v383
  %v409 = vmul.f32 %v384, %v384
  %v410 = vmul.f32 %v385, %v385
  %v411 = vmul.f32 %v386, %v386
  %v412 = vmul.f32 %v387, %v387
  %v413 = vmul.f32 %v388, %v388
  %v414 = vmul.f32 %v389, %v389
  %v415 = vmul.f32 %v390, %v390
  %v416 = vmul.f32 %v391, %v391
  %v417 = vadd.f32 %v407, %v408
  %v418 = vadd.f32 %v417, %v409
  %v419 = vadd.f32 %v418, %v410
  %v420 = vsel %vm395, %v411, 0.0
  %v421 = vadd.f32 %v419, %v420
  %422 = vadd.xlane.f32.xlu0 %v421
  %v423 = vpop.xlane.xlu0 %422
  %v424 = vadd.f32 %v412, %v413
  %v425 = vadd.f32 %v424, %v414
  %v426 = vadd.f32 %v425, %v415
  %v427 = vsel %vm395, %v416, 0.0
  %v428 = vadd.f32 %v426, %v427
  %429 = vadd.xlane.f32.xlu0 %v428
  %v430 = vpop.xlane.xlu0 %429
  %v431 = vrcp.pop 392.0
  %v432 = vmul.f32 %v399, %v431
  %v433 = vmul.f32 %v406, %v431
  %v434 = vmul.f32 %v423, %v431
  %v435 = vmul.f32 %v430, %v431
  %v436 = vmul.f32 %v432, %v432
  %v437 = vmul.f32 %v433, %v433
  %v438 = vsub.f32 %v434, %v436
  %v439 = vsub.f32 %v435, %v437
  %v440 = vmax.f32 %v438, 0.0
  %v441 = vmax.f32 %v439, 0.0
  %v442 = vld [vmem:[%s6] sm:$0xff]
  %v443 = vld [vmem:[%s6 + $0x8] sm:$0xff]
  %v444 = vadd.f32 %v440, 1e-05
  %v445 = vadd.f32 %v441, 1e-05
  %v446 = vrsqrt.pop %v444
  %v447 = vrsqrt.pop %v445
  %v448 = vmul.f32 %v442, %v446
  %v449 = vmul.f32 %v443, %v447
  %v450 = vld [vmem:[%s7] sm:$0xff]
  %v451 = vld [vmem:[%s7 + $0x8] sm:$0xff]
  %v452 = vmul.f32 %v432, %v448
  %v453 = vmul.f32 %v433, %v449
  %v454 = vsub.f32 %v450, %v452
  %v455 = vsub.f32 %v451, %v453
  %457 = vset.pattern.permute.xlu0 0
  %458 = vperm.xlu0 %457, %v448
  %v459 = vpop.permute.xlu0 %458
  %462 = vset.pattern.permute.xlu0 0
  %463 = vperm.xlu0 %462, %v449
  %v464 = vpop.permute.xlu0 %463
  %v466 = vmul.f32 %v346, %v459
  %v467 = vmul.f32 %v347, %v459
  %v468 = vmul.f32 %v348, %v459
  %v469 = vmul.f32 %v349, %v459
  %v470 = vmul.f32 %v350, %v459
  %v471 = vmul.f32 %v351, %v464
  %v472 = vmul.f32 %v352, %v464
  %v473 = vmul.f32 %v353, %v464
  %v474 = vmul.f32 %v354, %v464
  %v475 = vmul.f32 %v355, %v464
  %477 = vset.pattern.permute.xlu0 0
  %478 = vperm.xlu0 %477, %v454
  %v479 = vpop.permute.xlu0 %478
  %482 = vset.pattern.permute.xlu0 0
  %483 = vperm.xlu0 %482, %v455
  %v484 = vpop.permute.xlu0 %483
  %v486 = vadd.f32 %v466, %v479
  %v487 = vadd.f32 %v467, %v479
  %v488 = vadd.f32 %v468, %v479
  %v489 = vadd.f32 %v469, %v479
  %v490 = vadd.f32 %v470, %v479
  %v491 = vadd.f32 %v471, %v484
  %v492 = vadd.f32 %v472, %v484
  %v493 = vadd.f32 %v473, %v484
  %v494 = vadd.f32 %v474, %v484
  %v495 = vadd.f32 %v475, %v484
  %v496 = vmax.f32 %v486, 0.0
  %v497 = vmax.f32 %v487, 0.0
  %v498 = vmax.f32 %v488, 0.0
  %v499 = vmax.f32 %v489, 0.0
  %v500 = vmax.f32 %v490, 0.0
  %v501 = vmax.f32 %v491, 0.0
  %v502 = vmax.f32 %v492, 0.0
  %v503 = vmax.f32 %v493, 0.0
  %v504 = vmax.f32 %v494, 0.0
  %v505 = vmax.f32 %v495, 0.0
  %v506 = vmul.f32 %v496, %v360
  %v507 = vmul.f32 %v497, %v364
  %v508 = vmul.f32 %v498, %v368
  %v509 = vmul.f32 %v499, %v372
  %v510 = vmul.f32 %v500, %v376
  %v511 = vmul.f32 %v501, %v360
  %v512 = vmul.f32 %v502, %v364
  %v513 = vmul.f32 %v503, %v368
  %v514 = vmul.f32 %v504, %v372
  %v515 = vmul.f32 %v505, %v376
  %v516 = vpack.c.bf16 %v511, %v506
  %v517 = vpack.c.bf16 %v512, %v507
  %v518 = vpack.c.bf16 %v513, %v508
  %v519 = vpack.c.bf16 %v514, %v509
  %v520 = vpack.c.bf16 %v515, %v510
  %526 = vrot.lane.b32.xlu0 %v516, 127
  %v527 = vpop.permute.xlu0 %526
  %528 = vrot.lane.b32.xlu0 %v517, 127
  %v529 = vpop.permute.xlu0 %528
  %530 = vrot.lane.b32.xlu0 %v518, 127
  %v531 = vpop.permute.xlu0 %530
  %532 = vrot.lane.b32.xlu0 %v519, 127
  %v533 = vpop.permute.xlu0 %532
  %534 = vrot.lane.b32.xlu0 %v520, 127
  %v535 = vpop.permute.xlu0 %534
  %vm536 = vcmask 1039360
  %v537 = vsel %vm536, %v527, %v529
  %v538 = vsel %vm536, %v529, %v531
  %v539 = vsel %vm536, %v531, %v533
  %v540 = vsel %vm536, %v533, %v535
  %545 = vrot.lane.b32.xlu0 %v516, 126
  %v546 = vpop.permute.xlu0 %545
  %547 = vrot.lane.b32.xlu0 %v517, 126
  %v548 = vpop.permute.xlu0 %547
  %549 = vrot.lane.b32.xlu0 %v518, 126
  %v550 = vpop.permute.xlu0 %549
  %551 = vrot.lane.b32.xlu0 %v519, 126
  %v552 = vpop.permute.xlu0 %551
  %553 = vrot.lane.b32.xlu0 %v520, 126
  %v554 = vpop.permute.xlu0 %553
  %vm555 = vcmask 1031168
  %v556 = vsel %vm555, %v546, %v548
  %v557 = vsel %vm555, %v548, %v550
  %v558 = vsel %vm555, %v550, %v552
  %v559 = vsel %vm555, %v552, %v554
  %564 = vrot.lane.b32.xlu0 %v516, 112
  %v565 = vpop.permute.xlu0 %564
  %566 = vrot.lane.b32.xlu0 %v517, 112
  %v567 = vpop.permute.xlu0 %566
  %568 = vrot.lane.b32.xlu0 %v518, 112
  %v569 = vpop.permute.xlu0 %568
  %570 = vrot.lane.b32.xlu0 %v519, 112
  %v571 = vpop.permute.xlu0 %570
  %572 = vrot.lane.b32.xlu0 %v520, 112
  %v573 = vpop.permute.xlu0 %572
  %vm574 = vcmask 916480
  %v575 = vsel %vm574, %v565, %v567
  %v576 = vsel %vm574, %v567, %v569
  %v577 = vsel %vm574, %v569, %v571
  %v578 = vsel %vm574, %v571, %v573
  %583 = vrot.lane.b32.xlu0 %v516, 111
  %v584 = vpop.permute.xlu0 %583
  %585 = vrot.lane.b32.xlu0 %v517, 111
  %v586 = vpop.permute.xlu0 %585
  %587 = vrot.lane.b32.xlu0 %v518, 111
  %v588 = vpop.permute.xlu0 %587
  %589 = vrot.lane.b32.xlu0 %v519, 111
  %v590 = vpop.permute.xlu0 %589
  %591 = vrot.lane.b32.xlu0 %v520, 111
  %v592 = vpop.permute.xlu0 %591
  %vm593 = vcmask 908288
  %v594 = vsel %vm593, %v584, %v586
  %v595 = vsel %vm593, %v586, %v588
  %v596 = vsel %vm593, %v588, %v590
  %v597 = vsel %vm593, %v590, %v592
  %602 = vrot.lane.b32.xlu0 %v516, 110
  %v603 = vpop.permute.xlu0 %602
  %604 = vrot.lane.b32.xlu0 %v517, 110
  %v605 = vpop.permute.xlu0 %604
  %606 = vrot.lane.b32.xlu0 %v518, 110
  %v607 = vpop.permute.xlu0 %606
  %608 = vrot.lane.b32.xlu0 %v519, 110
  %v609 = vpop.permute.xlu0 %608
  %610 = vrot.lane.b32.xlu0 %v520, 110
  %v611 = vpop.permute.xlu0 %610
  %vm612 = vcmask 900096
  %v613 = vsel %vm612, %v603, %v605
  %v614 = vsel %vm612, %v605, %v607
  %v615 = vsel %vm612, %v607, %v609
  %v616 = vsel %vm612, %v609, %v611
  %621 = vrot.lane.b32.xlu0 %v516, 96
  %v622 = vpop.permute.xlu0 %621
  %623 = vrot.lane.b32.xlu0 %v517, 96
  %v624 = vpop.permute.xlu0 %623
  %625 = vrot.lane.b32.xlu0 %v518, 96
  %v626 = vpop.permute.xlu0 %625
  %627 = vrot.lane.b32.xlu0 %v519, 96
  %v628 = vpop.permute.xlu0 %627
  %629 = vrot.lane.b32.xlu0 %v520, 96
  %v630 = vpop.permute.xlu0 %629
  %vm631 = vcmask 785408
  %v632 = vsel %vm631, %v622, %v624
  %v633 = vsel %vm631, %v624, %v626
  %v634 = vsel %vm631, %v626, %v628
  %v635 = vsel %vm631, %v628, %v630
  %640 = vrot.lane.b32.xlu0 %v516, 95
  %v641 = vpop.permute.xlu0 %640
  %642 = vrot.lane.b32.xlu0 %v517, 95
  %v643 = vpop.permute.xlu0 %642
  %644 = vrot.lane.b32.xlu0 %v518, 95
  %v645 = vpop.permute.xlu0 %644
  %646 = vrot.lane.b32.xlu0 %v519, 95
  %v647 = vpop.permute.xlu0 %646
  %648 = vrot.lane.b32.xlu0 %v520, 95
  %v649 = vpop.permute.xlu0 %648
  %vm650 = vcmask 777216
  %v651 = vsel %vm650, %v641, %v643
  %v652 = vsel %vm650, %v643, %v645
  %v653 = vsel %vm650, %v645, %v647
  %v654 = vsel %vm650, %v647, %v649
  %659 = vrot.lane.b32.xlu0 %v516, 94
  %v660 = vpop.permute.xlu0 %659
  %661 = vrot.lane.b32.xlu0 %v517, 94
  %v662 = vpop.permute.xlu0 %661
  %663 = vrot.lane.b32.xlu0 %v518, 94
  %v664 = vpop.permute.xlu0 %663
  %665 = vrot.lane.b32.xlu0 %v519, 94
  %v666 = vpop.permute.xlu0 %665
  %667 = vrot.lane.b32.xlu0 %v520, 94
  %v668 = vpop.permute.xlu0 %667
  %vm669 = vcmask 769024
  %v670 = vsel %vm669, %v660, %v662
  %v671 = vsel %vm669, %v662, %v664
  %v672 = vsel %vm669, %v664, %v666
  %v673 = vsel %vm669, %v666, %v668
  %v678 = vld [vmem:[%s8] sm:$0xff]
  %v679 = vld [vmem:[%s8 + $0x8] sm:$0xff]
  %v680 = vld [vmem:[%s8 + $0x10] sm:$0xff]
  %v681 = vld [vmem:[%s8 + $0x18] sm:$0xff]
  %v682 = vld [vmem:[%s8 + $0x20] sm:$0xff]
  %v683 = vld [vmem:[%s8 + $0x28] sm:$0xff]
  %v684 = vld [vmem:[%s8 + $0x30] sm:$0xff]
  %v685 = vld [vmem:[%s8 + $0x38] sm:$0xff]
  %v686 = vld [vmem:[%s8 + $0x40] sm:$0xff]
  %v687 = vld [vmem:[%s8 + $0x48] sm:$0xff]
  %v688 = vld [vmem:[%s8 + $0x50] sm:$0xff]
  %v689 = vld [vmem:[%s8 + $0x58] sm:$0xff]
  %v690 = vld [vmem:[%s8 + $0x60] sm:$0xff]
  %v691 = vld [vmem:[%s8 + $0x68] sm:$0xff]
  %v692 = vld [vmem:[%s8 + $0x70] sm:$0xff]
  %v693 = vld [vmem:[%s8 + $0x78] sm:$0xff]
  %v694 = vld [vmem:[%s9] sm:$0xff]
  %v695 = vld [vmem:[%s9 + $0x8] sm:$0xff]
  %v696 = vld [vmem:[%s9 + $0x10] sm:$0xff]
  %v697 = vld [vmem:[%s9 + $0x18] sm:$0xff]
  %v698 = vld [vmem:[%s9 + $0x20] sm:$0xff]
  %v699 = vld [vmem:[%s9 + $0x28] sm:$0xff]
  %v700 = vld [vmem:[%s9 + $0x30] sm:$0xff]
  %v701 = vld [vmem:[%s9 + $0x38] sm:$0xff]
  %v702 = vld [vmem:[%s9 + $0x40] sm:$0xff]
  %v703 = vld [vmem:[%s9 + $0x48] sm:$0xff]
  %v704 = vld [vmem:[%s9 + $0x50] sm:$0xff]
  %v705 = vld [vmem:[%s9 + $0x58] sm:$0xff]
  %v706 = vld [vmem:[%s9 + $0x60] sm:$0xff]
  %v707 = vld [vmem:[%s9 + $0x68] sm:$0xff]
  %v708 = vld [vmem:[%s9 + $0x70] sm:$0xff]
  %v709 = vld [vmem:[%s9 + $0x78] sm:$0xff]
  %711 = vset.pattern.permute.xlu0 0
  %712 = vperm.xlu0 %711, %v694
  %v713 = vpop.permute.xlu0 %712
  %716 = vset.pattern.permute.xlu0 0
  %717 = vperm.xlu0 %716, %v695
  %v718 = vpop.permute.xlu0 %717
  %721 = vset.pattern.permute.xlu0 0
  %722 = vperm.xlu0 %721, %v696
  %v723 = vpop.permute.xlu0 %722
  %726 = vset.pattern.permute.xlu0 0
  %727 = vperm.xlu0 %726, %v697
  %v728 = vpop.permute.xlu0 %727
  %731 = vset.pattern.permute.xlu0 0
  %732 = vperm.xlu0 %731, %v698
  %v733 = vpop.permute.xlu0 %732
  %736 = vset.pattern.permute.xlu0 0
  %737 = vperm.xlu0 %736, %v699
  %v738 = vpop.permute.xlu0 %737
  %741 = vset.pattern.permute.xlu0 0
  %742 = vperm.xlu0 %741, %v700
  %v743 = vpop.permute.xlu0 %742
  %746 = vset.pattern.permute.xlu0 0
  %747 = vperm.xlu0 %746, %v701
  %v748 = vpop.permute.xlu0 %747
  %751 = vset.pattern.permute.xlu0 0
  %752 = vperm.xlu0 %751, %v702
  %v753 = vpop.permute.xlu0 %752
  %756 = vset.pattern.permute.xlu0 0
  %757 = vperm.xlu0 %756, %v703
  %v758 = vpop.permute.xlu0 %757
  %761 = vset.pattern.permute.xlu0 0
  %762 = vperm.xlu0 %761, %v704
  %v763 = vpop.permute.xlu0 %762
  %766 = vset.pattern.permute.xlu0 0
  %767 = vperm.xlu0 %766, %v705
  %v768 = vpop.permute.xlu0 %767
  %771 = vset.pattern.permute.xlu0 0
  %772 = vperm.xlu0 %771, %v706
  %v773 = vpop.permute.xlu0 %772
  %776 = vset.pattern.permute.xlu0 0
  %777 = vperm.xlu0 %776, %v707
  %v778 = vpop.permute.xlu0 %777
  %781 = vset.pattern.permute.xlu0 0
  %782 = vperm.xlu0 %781, %v708
  %v783 = vpop.permute.xlu0 %782
  %786 = vset.pattern.permute.xlu0 0
  %787 = vperm.xlu0 %786, %v709
  %v788 = vpop.permute.xlu0 %787
  %v806 = vunpack.c.l.b16 %v678
  %v807 = vunpack.c.h.b16 %v678
  %v808 = vunpack.c.l.b16 %v679
  %v809 = vunpack.c.h.b16 %v679
  %v810 = vunpack.c.l.b16 %v680
  %v811 = vunpack.c.h.b16 %v680
  %v812 = vunpack.c.l.b16 %v681
  %v813 = vunpack.c.h.b16 %v681
  %v814 = vunpack.c.l.b16 %v682
  %v815 = vunpack.c.h.b16 %v682
  %v816 = vunpack.c.l.b16 %v683
  %v817 = vunpack.c.h.b16 %v683
  %v818 = vunpack.c.l.b16 %v684
  %v819 = vunpack.c.h.b16 %v684
  %v820 = vunpack.c.l.b16 %v685
  %v821 = vunpack.c.h.b16 %v685
  %v822 = vunpack.c.l.b16 %v686
  %v823 = vunpack.c.h.b16 %v686
  %v824 = vunpack.c.l.b16 %v687
  %v825 = vunpack.c.h.b16 %v687
  %v826 = vunpack.c.l.b16 %v688
  %v827 = vunpack.c.h.b16 %v688
  %v828 = vunpack.c.l.b16 %v689
  %v829 = vunpack.c.h.b16 %v689
  %v830 = vunpack.c.l.b16 %v690
  %v831 = vunpack.c.h.b16 %v690
  %v832 = vunpack.c.l.b16 %v691
  %v833 = vunpack.c.h.b16 %v691
  %v834 = vunpack.c.l.b16 %v692
  %v835 = vunpack.c.h.b16 %v692
  %v836 = vunpack.c.l.b16 %v693
  %v837 = vunpack.c.h.b16 %v693
  %v838 = vpack.c.b16 %v808, %v806
  %v839 = vpack.c.b16 %v809, %v807
  %v840 = vpack.c.b16 %v812, %v810
  %v841 = vpack.c.b16 %v813, %v811
  %v842 = vpack.c.b16 %v816, %v814
  %v843 = vpack.c.b16 %v817, %v815
  %v844 = vpack.c.b16 %v820, %v818
  %v845 = vpack.c.b16 %v821, %v819
  %v846 = vpack.c.b16 %v824, %v822
  %v847 = vpack.c.b16 %v825, %v823
  %v848 = vpack.c.b16 %v828, %v826
  %v849 = vpack.c.b16 %v829, %v827
  %v850 = vpack.c.b16 %v832, %v830
  %v851 = vpack.c.b16 %v833, %v831
  %v852 = vpack.c.b16 %v836, %v834
  %v853 = vpack.c.b16 %v837, %v835
  %vm862 = vcmask 130048
  %v864 = vsel %vm862, %v839, 0
  %v867 = vsel %vm862, %v841, 0
  %v870 = vsel %vm862, %v843, 0
  %v873 = vsel %vm862, %v845, 0
  %v876 = vsel %vm862, %v847, 0
  %v879 = vsel %vm862, %v849, 0
  %v882 = vsel %vm862, %v851, 0
  %v885 = vsel %vm862, %v853, 0
  %887 = vmatprep.subr.bf16.mxu0 %v652
  %888 = vmatpush1.bf16.msra.mxu0 %v651
  %889 = vmatprep.subr.bf16.mxu0 %v633
  %890 = vmatpush1.bf16.msra.mxu0 %v632
  %891 = vmatprep.subr.bf16.mxu0 %v614
  %892 = vmatpush1.bf16.msra.mxu0 %v613
  %893 = vmatprep.subr.bf16.mxu0 %v595
  %894 = vmatpush1.bf16.msra.mxu0 %v594
  %895 = vmatprep.subr.bf16.mxu0 %v576
  %896 = vmatpush1.bf16.msra.mxu0 %v575
  %897 = vmatprep.subr.bf16.mxu0 %v557
  %898 = vmatpush1.bf16.msra.mxu0 %v556
  %899 = vmatprep.subr.bf16.mxu0 %v538
  %900 = vmatpush1.bf16.msra.mxu0 %v537
  %901 = vmatprep.subr.bf16.mxu0 %v517
  %902 = vmatpush1.bf16.msra.mxu0 %v516
  %903 = vmatprep.subr.bf16.mxu0 0
  %904 = vmatpush2.bf16.msra.mxu0 0
  %905 = vmatprep.subr.bf16.mxu0 0
  %906 = vmatpush2.bf16.msra.mxu0 0
  %907 = vmatprep.subr.bf16.mxu0 0
  %908 = vmatpush2.bf16.msra.mxu0 0
  %909 = vmatprep.subr.bf16.mxu0 0
  %910 = vmatpush2.bf16.msra.mxu0 0
  %911 = vmatprep.subr.bf16.mxu0 0
  %912 = vmatpush2.bf16.msra.mxu0 0
  %913 = vmatprep.subr.bf16.mxu0 0
  %914 = vmatpush2.bf16.msra.mxu0 0
  %915 = vmatprep.subr.bf16.mxu0 0
  %916 = vmatpush2.bf16.msra.mxu0 0
  %917 = vmatprep.subr.bf16.mxu0 %v671
  %918 = vmatpush2.bf16.msra.mxu0 %v670
  %919 = vmatprep.mubr.bf16.mxu0 %v864
  %920 = vmatmul.mubr.bf16.gmra.mxu0 %v838
  %v921 = vpop.f32.mrf.mxu0
  %v922 = vadd.f32 %v713, %v921
  %v923 = vpop.f32.mrf.mxu0
  %v924 = vadd.f32 %v713, %v923
  %v925 = vpop.f32.mrf.mxu0
  %v926 = vadd.f32 %v718, %v925
  %v927 = vpop.f32.mrf.mxu0
  %v928 = vadd.f32 %v718, %v927
  %929 = vmatprep.mubr.bf16.mxu0 %v867
  %930 = vmatmul.mubr.bf16.gmra.mxu0 %v840
  %v931 = vpop.f32.mrf.mxu0
  %v932 = vadd.f32 %v723, %v931
  %v933 = vpop.f32.mrf.mxu0
  %v934 = vadd.f32 %v723, %v933
  %v935 = vpop.f32.mrf.mxu0
  %v936 = vadd.f32 %v728, %v935
  %v937 = vpop.f32.mrf.mxu0
  %v938 = vadd.f32 %v728, %v937
  %939 = vmatprep.mubr.bf16.mxu0 %v870
  %940 = vmatmul.mubr.bf16.gmra.mxu0 %v842
  %v941 = vpop.f32.mrf.mxu0
  %v942 = vadd.f32 %v733, %v941
  %v943 = vpop.f32.mrf.mxu0
  %v944 = vadd.f32 %v733, %v943
  %v945 = vpop.f32.mrf.mxu0
  %v946 = vadd.f32 %v738, %v945
  %v947 = vpop.f32.mrf.mxu0
  %v948 = vadd.f32 %v738, %v947
  %949 = vmatprep.mubr.bf16.mxu0 %v873
  %950 = vmatmul.mubr.bf16.gmra.mxu0 %v844
  %v951 = vpop.f32.mrf.mxu0
  %v952 = vadd.f32 %v743, %v951
  %v953 = vpop.f32.mrf.mxu0
  %v954 = vadd.f32 %v743, %v953
  %v955 = vpop.f32.mrf.mxu0
  %v956 = vadd.f32 %v748, %v955
  %v957 = vpop.f32.mrf.mxu0
  %v958 = vadd.f32 %v748, %v957
  %959 = vmatprep.mubr.bf16.mxu0 %v876
  %960 = vmatmul.mubr.bf16.gmra.mxu0 %v846
  %v961 = vpop.f32.mrf.mxu0
  %v962 = vadd.f32 %v753, %v961
  %v963 = vpop.f32.mrf.mxu0
  %v964 = vadd.f32 %v753, %v963
  %v965 = vpop.f32.mrf.mxu0
  %v966 = vadd.f32 %v758, %v965
  %v967 = vpop.f32.mrf.mxu0
  %v968 = vadd.f32 %v758, %v967
  %969 = vmatprep.mubr.bf16.mxu0 %v879
  %970 = vmatmul.mubr.bf16.gmra.mxu0 %v848
  %v971 = vpop.f32.mrf.mxu0
  %v972 = vadd.f32 %v763, %v971
  %v973 = vpop.f32.mrf.mxu0
  %v974 = vadd.f32 %v763, %v973
  %v975 = vpop.f32.mrf.mxu0
  %v976 = vadd.f32 %v768, %v975
  %v977 = vpop.f32.mrf.mxu0
  %v978 = vadd.f32 %v768, %v977
  %979 = vmatprep.mubr.bf16.mxu0 %v882
  %980 = vmatmul.mubr.bf16.gmra.mxu0 %v850
  %v981 = vpop.f32.mrf.mxu0
  %v982 = vadd.f32 %v773, %v981
  %v983 = vpop.f32.mrf.mxu0
  %v984 = vadd.f32 %v773, %v983
  %v985 = vpop.f32.mrf.mxu0
  %v986 = vadd.f32 %v778, %v985
  %v987 = vpop.f32.mrf.mxu0
  %v988 = vadd.f32 %v778, %v987
  %989 = vmatprep.mubr.bf16.mxu0 %v885
  %990 = vmatmul.mubr.bf16.gmra.mxu0 %v852
  %v991 = vpop.f32.mrf.mxu0
  %v992 = vadd.f32 %v783, %v991
  %v993 = vpop.f32.mrf.mxu0
  %v994 = vadd.f32 %v783, %v993
  %v995 = vpop.f32.mrf.mxu0
  %v996 = vadd.f32 %v788, %v995
  %v997 = vpop.f32.mrf.mxu0
  %v998 = vadd.f32 %v788, %v997
  %999 = vdwg.mxu0
  %1000 = vmatprep.subr.bf16.mxu0 %v654
  %1001 = vmatpush1.bf16.msra.mxu0 %v653
  %1002 = vmatprep.subr.bf16.mxu0 %v635
  %1003 = vmatpush1.bf16.msra.mxu0 %v634
  %1004 = vmatprep.subr.bf16.mxu0 %v616
  %1005 = vmatpush1.bf16.msra.mxu0 %v615
  %1006 = vmatprep.subr.bf16.mxu0 %v597
  %1007 = vmatpush1.bf16.msra.mxu0 %v596
  %1008 = vmatprep.subr.bf16.mxu0 %v578
  %1009 = vmatpush1.bf16.msra.mxu0 %v577
  %1010 = vmatprep.subr.bf16.mxu0 %v559
  %1011 = vmatpush1.bf16.msra.mxu0 %v558
  %1012 = vmatprep.subr.bf16.mxu0 %v540
  %1013 = vmatpush1.bf16.msra.mxu0 %v539
  %1014 = vmatprep.subr.bf16.mxu0 %v519
  %1015 = vmatpush1.bf16.msra.mxu0 %v518
  %1016 = vmatprep.subr.bf16.mxu0 0
  %1017 = vmatpush2.bf16.msra.mxu0 0
  %1018 = vmatprep.subr.bf16.mxu0 0
  %1019 = vmatpush2.bf16.msra.mxu0 0
  %1020 = vmatprep.subr.bf16.mxu0 0
  %1021 = vmatpush2.bf16.msra.mxu0 0
  %1022 = vmatprep.subr.bf16.mxu0 0
  %1023 = vmatpush2.bf16.msra.mxu0 0
  %1024 = vmatprep.subr.bf16.mxu0 0
  %1025 = vmatpush2.bf16.msra.mxu0 0
  %1026 = vmatprep.subr.bf16.mxu0 0
  %1027 = vmatpush2.bf16.msra.mxu0 0
  %1028 = vmatprep.subr.bf16.mxu0 0
  %1029 = vmatpush2.bf16.msra.mxu0 0
  %1030 = vmatprep.subr.bf16.mxu0 %v673
  %1031 = vmatpush2.bf16.msra.mxu0 %v672
  %1032 = vmatprep.mubr.bf16.mxu0 %v864
  %1033 = vmatmul.mubr.bf16.gmra.mxu0 %v838
  %v1034 = vpop.f32.mrf.mxu0
  %v1035 = vadd.f32 %v713, %v1034
  %v1036 = vpop.f32.mrf.mxu0
  %v1037 = vadd.f32 %v713, %v1036
  %v1038 = vpop.f32.mrf.mxu0
  %v1039 = vadd.f32 %v718, %v1038
  %v1040 = vpop.f32.mrf.mxu0
  %v1041 = vadd.f32 %v718, %v1040
  %1042 = vmatprep.mubr.bf16.mxu0 %v867
  %1043 = vmatmul.mubr.bf16.gmra.mxu0 %v840
  %v1044 = vpop.f32.mrf.mxu0
  %v1045 = vadd.f32 %v723, %v1044
  %v1046 = vpop.f32.mrf.mxu0
  %v1047 = vadd.f32 %v723, %v1046
  %v1048 = vpop.f32.mrf.mxu0
  %v1049 = vadd.f32 %v728, %v1048
  %v1050 = vpop.f32.mrf.mxu0
  %v1051 = vadd.f32 %v728, %v1050
  %1052 = vmatprep.mubr.bf16.mxu0 %v870
  %1053 = vmatmul.mubr.bf16.gmra.mxu0 %v842
  %v1054 = vpop.f32.mrf.mxu0
  %v1055 = vadd.f32 %v733, %v1054
  %v1056 = vpop.f32.mrf.mxu0
  %v1057 = vadd.f32 %v733, %v1056
  %v1058 = vpop.f32.mrf.mxu0
  %v1059 = vadd.f32 %v738, %v1058
  %v1060 = vpop.f32.mrf.mxu0
  %v1061 = vadd.f32 %v738, %v1060
  %1062 = vmatprep.mubr.bf16.mxu0 %v873
  %1063 = vmatmul.mubr.bf16.gmra.mxu0 %v844
  %v1064 = vpop.f32.mrf.mxu0
  %v1065 = vadd.f32 %v743, %v1064
  %v1066 = vpop.f32.mrf.mxu0
  %v1067 = vadd.f32 %v743, %v1066
  %v1068 = vpop.f32.mrf.mxu0
  %v1069 = vadd.f32 %v748, %v1068
  %v1070 = vpop.f32.mrf.mxu0
  %v1071 = vadd.f32 %v748, %v1070
  %1072 = vmatprep.mubr.bf16.mxu0 %v876
  %1073 = vmatmul.mubr.bf16.gmra.mxu0 %v846
  %v1074 = vpop.f32.mrf.mxu0
  %v1075 = vadd.f32 %v753, %v1074
  %v1076 = vpop.f32.mrf.mxu0
  %v1077 = vadd.f32 %v753, %v1076
  %v1078 = vpop.f32.mrf.mxu0
  %v1079 = vadd.f32 %v758, %v1078
  %v1080 = vpop.f32.mrf.mxu0
  %v1081 = vadd.f32 %v758, %v1080
  %1082 = vmatprep.mubr.bf16.mxu0 %v879
  %1083 = vmatmul.mubr.bf16.gmra.mxu0 %v848
  %v1084 = vpop.f32.mrf.mxu0
  %v1085 = vadd.f32 %v763, %v1084
  %v1086 = vpop.f32.mrf.mxu0
  %v1087 = vadd.f32 %v763, %v1086
  %v1088 = vpop.f32.mrf.mxu0
  %v1089 = vadd.f32 %v768, %v1088
  %v1090 = vpop.f32.mrf.mxu0
  %v1091 = vadd.f32 %v768, %v1090
  %1092 = vmatprep.mubr.bf16.mxu0 %v882
  %1093 = vmatmul.mubr.bf16.gmra.mxu0 %v850
  %v1094 = vpop.f32.mrf.mxu0
  %v1095 = vadd.f32 %v773, %v1094
  %v1096 = vpop.f32.mrf.mxu0
  %v1097 = vadd.f32 %v773, %v1096
  %v1098 = vpop.f32.mrf.mxu0
  %v1099 = vadd.f32 %v778, %v1098
  %v1100 = vpop.f32.mrf.mxu0
  %v1101 = vadd.f32 %v778, %v1100
  %1102 = vmatprep.mubr.bf16.mxu0 %v885
  %1103 = vmatmul.mubr.bf16.gmra.mxu0 %v852
  %v1104 = vpop.f32.mrf.mxu0
  %v1105 = vadd.f32 %v783, %v1104
  %v1106 = vpop.f32.mrf.mxu0
  %v1107 = vadd.f32 %v783, %v1106
  %v1108 = vpop.f32.mrf.mxu0
  %v1109 = vadd.f32 %v788, %v1108
  %v1110 = vpop.f32.mrf.mxu0
  %v1111 = vadd.f32 %v788, %v1110
  %1112 = vdwg.mxu0
  %v1113 = vmax.f32 %v922, 0.0
  %v1114 = vmax.f32 %v924, 0.0
  %v1115 = vmax.f32 %v1035, 0.0
  %v1116 = vmax.f32 %v1037, 0.0
  %v1117 = vmax.f32 %v926, 0.0
  %v1118 = vmax.f32 %v928, 0.0
  %v1119 = vmax.f32 %v1039, 0.0
  %v1120 = vmax.f32 %v1041, 0.0
  %v1121 = vmax.f32 %v932, 0.0
  %v1122 = vmax.f32 %v934, 0.0
  %v1123 = vmax.f32 %v1045, 0.0
  %v1124 = vmax.f32 %v1047, 0.0
  %v1125 = vmax.f32 %v936, 0.0
  %v1126 = vmax.f32 %v938, 0.0
  %v1127 = vmax.f32 %v1049, 0.0
  %v1128 = vmax.f32 %v1051, 0.0
  %v1129 = vmax.f32 %v942, 0.0
  %v1130 = vmax.f32 %v944, 0.0
  %v1131 = vmax.f32 %v1055, 0.0
  %v1132 = vmax.f32 %v1057, 0.0
  %v1133 = vmax.f32 %v946, 0.0
  %v1134 = vmax.f32 %v948, 0.0
  %v1135 = vmax.f32 %v1059, 0.0
  %v1136 = vmax.f32 %v1061, 0.0
  %v1137 = vmax.f32 %v952, 0.0
  %v1138 = vmax.f32 %v954, 0.0
  %v1139 = vmax.f32 %v1065, 0.0
  %v1140 = vmax.f32 %v1067, 0.0
  %v1141 = vmax.f32 %v956, 0.0
  %v1142 = vmax.f32 %v958, 0.0
  %v1143 = vmax.f32 %v1069, 0.0
  %v1144 = vmax.f32 %v1071, 0.0
  %v1145 = vmax.f32 %v962, 0.0
  %v1146 = vmax.f32 %v964, 0.0
  %v1147 = vmax.f32 %v1075, 0.0
  %v1148 = vmax.f32 %v1077, 0.0
  %v1149 = vmax.f32 %v966, 0.0
  %v1150 = vmax.f32 %v968, 0.0
  %v1151 = vmax.f32 %v1079, 0.0
  %v1152 = vmax.f32 %v1081, 0.0
  %v1153 = vmax.f32 %v972, 0.0
  %v1154 = vmax.f32 %v974, 0.0
  %v1155 = vmax.f32 %v1085, 0.0
  %v1156 = vmax.f32 %v1087, 0.0
  %v1157 = vmax.f32 %v976, 0.0
  %v1158 = vmax.f32 %v978, 0.0
  %v1159 = vmax.f32 %v1089, 0.0
  %v1160 = vmax.f32 %v1091, 0.0
  %v1161 = vmax.f32 %v982, 0.0
  %v1162 = vmax.f32 %v984, 0.0
  %v1163 = vmax.f32 %v1095, 0.0
  %v1164 = vmax.f32 %v1097, 0.0
  %v1165 = vmax.f32 %v986, 0.0
  %v1166 = vmax.f32 %v988, 0.0
  %v1167 = vmax.f32 %v1099, 0.0
  %v1168 = vmax.f32 %v1101, 0.0
  %v1169 = vmax.f32 %v992, 0.0
  %v1170 = vmax.f32 %v994, 0.0
  %v1171 = vmax.f32 %v1105, 0.0
  %v1172 = vmax.f32 %v1107, 0.0
  %v1173 = vmax.f32 %v996, 0.0
  %v1174 = vmax.f32 %v998, 0.0
  %v1175 = vmax.f32 %v1109, 0.0
  %v1176 = vmax.f32 %v1111, 0.0
  %v1177 = vld [vmem:[%s3] sm:$0xff]
  %v1178 = vld [vmem:[%s3 + $0x8] sm:$0xff]
  %v1179 = vld [vmem:[%s3 + $0x10] sm:$0xff]
  %v1180 = vld [vmem:[%s3 + $0x18] sm:$0xff]
  %v1181 = vld [vmem:[%s3 + $0x20] sm:$0xff]
  %v1182 = vld [vmem:[%s3 + $0x28] sm:$0xff]
  %v1183 = vld [vmem:[%s3 + $0x30] sm:$0xff]
  %v1184 = vld [vmem:[%s3 + $0x38] sm:$0xff]
  %v1185 = vld [vmem:[%s3 + $0x40] sm:$0xff]
  %v1186 = vld [vmem:[%s3 + $0x48] sm:$0xff]
  %v1187 = vld [vmem:[%s3 + $0x50] sm:$0xff]
  %v1188 = vld [vmem:[%s3 + $0x58] sm:$0xff]
  %v1189 = vld [vmem:[%s3 + $0x60] sm:$0xff]
  %v1190 = vld [vmem:[%s3 + $0x68] sm:$0xff]
  %v1191 = vld [vmem:[%s3 + $0x70] sm:$0xff]
  %v1192 = vld [vmem:[%s3 + $0x78] sm:$0xff]
  %v1193 = vld [vmem:[%s3 + $0x80] sm:$0xff]
  %v1194 = vld [vmem:[%s3 + $0x88] sm:$0xff]
  %v1195 = vld [vmem:[%s3 + $0x90] sm:$0xff]
  %v1196 = vld [vmem:[%s3 + $0x98] sm:$0xff]
  %v1197 = vld [vmem:[%s3 + $0xa0] sm:$0xff]
  %v1198 = vld [vmem:[%s3 + $0xa8] sm:$0xff]
  %v1199 = vld [vmem:[%s3 + $0xb0] sm:$0xff]
  %v1200 = vld [vmem:[%s3 + $0xb8] sm:$0xff]
  %v1201 = vld [vmem:[%s3 + $0xc0] sm:$0xff]
  %v1202 = vld [vmem:[%s3 + $0xc8] sm:$0xff]
  %v1203 = vld [vmem:[%s3 + $0xd0] sm:$0xff]
  %v1204 = vld [vmem:[%s3 + $0xd8] sm:$0xff]
  %v1205 = vld [vmem:[%s3 + $0xe0] sm:$0xff]
  %v1206 = vld [vmem:[%s3 + $0xe8] sm:$0xff]
  %v1207 = vld [vmem:[%s3 + $0xf0] sm:$0xff]
  %v1208 = vld [vmem:[%s3 + $0xf8] sm:$0xff]
  %v1209 = vld [vmem:[%s3 + $0x100] sm:$0xff]
  %v1210 = vld [vmem:[%s3 + $0x108] sm:$0xff]
  %v1211 = vld [vmem:[%s3 + $0x110] sm:$0xff]
  %v1212 = vld [vmem:[%s3 + $0x118] sm:$0xff]
  %v1213 = vld [vmem:[%s3 + $0x120] sm:$0xff]
  %v1214 = vld [vmem:[%s3 + $0x128] sm:$0xff]
  %v1215 = vld [vmem:[%s3 + $0x130] sm:$0xff]
  %v1216 = vld [vmem:[%s3 + $0x138] sm:$0xff]
  %v1217 = vld [vmem:[%s3 + $0x140] sm:$0xff]
  %v1218 = vld [vmem:[%s3 + $0x148] sm:$0xff]
  %v1219 = vld [vmem:[%s3 + $0x150] sm:$0xff]
  %v1220 = vld [vmem:[%s3 + $0x158] sm:$0xff]
  %v1221 = vld [vmem:[%s3 + $0x160] sm:$0xff]
  %v1222 = vld [vmem:[%s3 + $0x168] sm:$0xff]
  %v1223 = vld [vmem:[%s3 + $0x170] sm:$0xff]
  %v1224 = vld [vmem:[%s3 + $0x178] sm:$0xff]
  %v1225 = vld [vmem:[%s3 + $0x180] sm:$0xff]
  %v1226 = vld [vmem:[%s3 + $0x188] sm:$0xff]
  %v1227 = vld [vmem:[%s3 + $0x190] sm:$0xff]
  %v1228 = vld [vmem:[%s3 + $0x198] sm:$0xff]
  %v1229 = vld [vmem:[%s3 + $0x1a0] sm:$0xff]
  %v1230 = vld [vmem:[%s3 + $0x1a8] sm:$0xff]
  %v1231 = vld [vmem:[%s3 + $0x1b0] sm:$0xff]
  %v1232 = vld [vmem:[%s3 + $0x1b8] sm:$0xff]
  %v1233 = vld [vmem:[%s3 + $0x1c0] sm:$0xff]
  %v1234 = vld [vmem:[%s3 + $0x1c8] sm:$0xff]
  %v1235 = vld [vmem:[%s3 + $0x1d0] sm:$0xff]
  %v1236 = vld [vmem:[%s3 + $0x1d8] sm:$0xff]
  %v1237 = vld [vmem:[%s3 + $0x1e0] sm:$0xff]
  %v1238 = vld [vmem:[%s3 + $0x1e8] sm:$0xff]
  %v1239 = vld [vmem:[%s3 + $0x1f0] sm:$0xff]
  %v1240 = vld [vmem:[%s3 + $0x1f8] sm:$0xff]
  %1241 = vmatprep.subr.mxu0 0.0
  %1242 = vmatpush1.msra.mxu0 %v1192
  %1243 = vmatprep.subr.mxu0 0.0
  %1244 = vmatpush1.msra.mxu0 %v1191
  %1245 = vmatprep.subr.mxu0 0.0
  %1246 = vmatpush1.msra.mxu0 %v1190
  %1247 = vmatprep.subr.mxu0 0.0
  %1248 = vmatpush1.msra.mxu0 %v1189
  %1249 = vmatprep.subr.mxu0 0.0
  %1250 = vmatpush1.msra.mxu0 %v1188
  %1251 = vmatprep.subr.mxu0 0.0
  %1252 = vmatpush1.msra.mxu0 %v1187
  %1253 = vmatprep.subr.mxu0 0.0
  %1254 = vmatpush1.msra.mxu0 %v1186
  %1255 = vmatprep.subr.mxu0 0.0
  %1256 = vmatpush1.msra.mxu0 %v1185
  %1257 = vmatprep.subr.mxu0 0.0
  %1258 = vmatpush1.msra.mxu0 %v1184
  %1259 = vmatprep.subr.mxu0 0.0
  %1260 = vmatpush1.msra.mxu0 %v1183
  %1261 = vmatprep.subr.mxu0 0.0
  %1262 = vmatpush1.msra.mxu0 %v1182
  %1263 = vmatprep.subr.mxu0 0.0
  %1264 = vmatpush1.msra.mxu0 %v1181
  %1265 = vmatprep.subr.mxu0 0.0
  %1266 = vmatpush1.msra.mxu0 %v1180
  %1267 = vmatprep.subr.mxu0 0.0
  %1268 = vmatpush1.msra.mxu0 %v1179
  %1269 = vmatprep.subr.mxu0 0.0
  %1270 = vmatpush1.msra.mxu0 %v1178
  %1271 = vmatprep.subr.mxu0 0.0
  %1272 = vmatpush1.msra.mxu0 %v1177
  %1273 = vmatprep.subr.mxu0 0.0
  %1274 = vmatpush2.msra.mxu0 %v1208
  %1275 = vmatprep.subr.mxu0 0.0
  %1276 = vmatpush2.msra.mxu0 %v1207
  %1277 = vmatprep.subr.mxu0 0.0
  %1278 = vmatpush2.msra.mxu0 %v1206
  %1279 = vmatprep.subr.mxu0 0.0
  %1280 = vmatpush2.msra.mxu0 %v1205
  %1281 = vmatprep.subr.mxu0 0.0
  %1282 = vmatpush2.msra.mxu0 %v1204
  %1283 = vmatprep.subr.mxu0 0.0
  %1284 = vmatpush2.msra.mxu0 %v1203
  %1285 = vmatprep.subr.mxu0 0.0
  %1286 = vmatpush2.msra.mxu0 %v1202
  %1287 = vmatprep.subr.mxu0 0.0
  %1288 = vmatpush2.msra.mxu0 %v1201
  %1289 = vmatprep.subr.mxu0 0.0
  %1290 = vmatpush2.msra.mxu0 %v1200
  %1291 = vmatprep.subr.mxu0 0.0
  %1292 = vmatpush2.msra.mxu0 %v1199
  %1293 = vmatprep.subr.mxu0 0.0
  %1294 = vmatpush2.msra.mxu0 %v1198
  %1295 = vmatprep.subr.mxu0 0.0
  %1296 = vmatpush2.msra.mxu0 %v1197
  %1297 = vmatprep.subr.mxu0 0.0
  %1298 = vmatpush2.msra.mxu0 %v1196
  %1299 = vmatprep.subr.mxu0 0.0
  %1300 = vmatpush2.msra.mxu0 %v1195
  %1301 = vmatprep.subr.mxu0 0.0
  %1302 = vmatpush2.msra.mxu0 %v1194
  %1303 = vmatprep.subr.mxu0 0.0
  %1304 = vmatpush2.msra.mxu0 %v1193
  %1305 = vmatprep.mubr.f32.mxu0 %v1114
  %1306 = vmatmul.mubr.f32.gmra.mxu0 %v1113
  %v1307 = vpop.f32.mrf.mxu0
  %v1308 = vadd.f32 0.0, %v1307
  %v1309 = vpop.f32.mrf.mxu0
  %1310 = vmatprep.mubr.f32.mxu0 %v1118
  %1311 = vmatmul.mubr.f32.gmra.mxu0 %v1117
  %v1312 = vpop.f32.mrf.mxu0
  %v1313 = vadd.f32 0.0, %v1312
  %v1314 = vpop.f32.mrf.mxu0
  %1315 = vmatprep.mubr.f32.mxu0 %v1122
  %1316 = vmatmul.mubr.f32.gmra.mxu0 %v1121
  %v1317 = vpop.f32.mrf.mxu0
  %v1318 = vadd.f32 0.0, %v1317
  %v1319 = vpop.f32.mrf.mxu0
  %1320 = vmatprep.mubr.f32.mxu0 %v1126
  %1321 = vmatmul.mubr.f32.gmra.mxu0 %v1125
  %v1322 = vpop.f32.mrf.mxu0
  %v1323 = vadd.f32 0.0, %v1322
  %v1324 = vpop.f32.mrf.mxu0
  %1325 = vmatprep.mubr.f32.mxu0 %v1130
  %1326 = vmatmul.mubr.f32.gmra.mxu0 %v1129
  %v1327 = vpop.f32.mrf.mxu0
  %v1328 = vadd.f32 0.0, %v1327
  %v1329 = vpop.f32.mrf.mxu0
  %1330 = vmatprep.mubr.f32.mxu0 %v1134
  %1331 = vmatmul.mubr.f32.gmra.mxu0 %v1133
  %v1332 = vpop.f32.mrf.mxu0
  %v1333 = vadd.f32 0.0, %v1332
  %v1334 = vpop.f32.mrf.mxu0
  %1335 = vmatprep.mubr.f32.mxu0 %v1138
  %1336 = vmatmul.mubr.f32.gmra.mxu0 %v1137
  %v1337 = vpop.f32.mrf.mxu0
  %v1338 = vadd.f32 0.0, %v1337
  %v1339 = vpop.f32.mrf.mxu0
  %1340 = vmatprep.mubr.f32.mxu0 %v1142
  %1341 = vmatmul.mubr.f32.gmra.mxu0 %v1141
  %v1342 = vpop.f32.mrf.mxu0
  %v1343 = vadd.f32 0.0, %v1342
  %v1344 = vpop.f32.mrf.mxu0
  %1345 = vmatprep.mubr.f32.mxu0 %v1146
  %1346 = vmatmul.mubr.f32.gmra.mxu0 %v1145
  %v1347 = vpop.f32.mrf.mxu0
  %v1348 = vadd.f32 0.0, %v1347
  %v1349 = vpop.f32.mrf.mxu0
  %1350 = vmatprep.mubr.f32.mxu0 %v1150
  %1351 = vmatmul.mubr.f32.gmra.mxu0 %v1149
  %v1352 = vpop.f32.mrf.mxu0
  %v1353 = vadd.f32 0.0, %v1352
  %v1354 = vpop.f32.mrf.mxu0
  %1355 = vmatprep.mubr.f32.mxu0 %v1154
  %1356 = vmatmul.mubr.f32.gmra.mxu0 %v1153
  %v1357 = vpop.f32.mrf.mxu0
  %v1358 = vadd.f32 0.0, %v1357
  %v1359 = vpop.f32.mrf.mxu0
  %1360 = vmatprep.mubr.f32.mxu0 %v1158
  %1361 = vmatmul.mubr.f32.gmra.mxu0 %v1157
  %v1362 = vpop.f32.mrf.mxu0
  %v1363 = vadd.f32 0.0, %v1362
  %v1364 = vpop.f32.mrf.mxu0
  %1365 = vmatprep.mubr.f32.mxu0 %v1162
  %1366 = vmatmul.mubr.f32.gmra.mxu0 %v1161
  %v1367 = vpop.f32.mrf.mxu0
  %v1368 = vadd.f32 0.0, %v1367
  %v1369 = vpop.f32.mrf.mxu0
  %1370 = vmatprep.mubr.f32.mxu0 %v1166
  %1371 = vmatmul.mubr.f32.gmra.mxu0 %v1165
  %v1372 = vpop.f32.mrf.mxu0
  %v1373 = vadd.f32 0.0, %v1372
  %v1374 = vpop.f32.mrf.mxu0
  %1375 = vmatprep.mubr.f32.mxu0 %v1170
  %1376 = vmatmul.mubr.f32.gmra.mxu0 %v1169
  %v1377 = vpop.f32.mrf.mxu0
  %v1378 = vadd.f32 0.0, %v1377
  %v1379 = vpop.f32.mrf.mxu0
  %1380 = vmatprep.mubr.f32.mxu0 %v1174
  %1381 = vmatmul.mubr.f32.gmra.mxu0 %v1173
  %v1382 = vpop.f32.mrf.mxu0
  %v1383 = vadd.f32 0.0, %v1382
  %v1384 = vpop.f32.mrf.mxu0
  %1385 = vdwg.mxu0
  %1386 = vmatprep.subr.mxu0 0.0
  %1387 = vmatpush1.msra.mxu0 %v1224
  %1388 = vmatprep.subr.mxu0 0.0
  %1389 = vmatpush1.msra.mxu0 %v1223
  %1390 = vmatprep.subr.mxu0 0.0
  %1391 = vmatpush1.msra.mxu0 %v1222
  %1392 = vmatprep.subr.mxu0 0.0
  %1393 = vmatpush1.msra.mxu0 %v1221
  %1394 = vmatprep.subr.mxu0 0.0
  %1395 = vmatpush1.msra.mxu0 %v1220
  %1396 = vmatprep.subr.mxu0 0.0
  %1397 = vmatpush1.msra.mxu0 %v1219
  %1398 = vmatprep.subr.mxu0 0.0
  %1399 = vmatpush1.msra.mxu0 %v1218
  %1400 = vmatprep.subr.mxu0 0.0
  %1401 = vmatpush1.msra.mxu0 %v1217
  %1402 = vmatprep.subr.mxu0 0.0
  %1403 = vmatpush1.msra.mxu0 %v1216
  %1404 = vmatprep.subr.mxu0 0.0
  %1405 = vmatpush1.msra.mxu0 %v1215
  %1406 = vmatprep.subr.mxu0 0.0
  %1407 = vmatpush1.msra.mxu0 %v1214
  %1408 = vmatprep.subr.mxu0 0.0
  %1409 = vmatpush1.msra.mxu0 %v1213
  %1410 = vmatprep.subr.mxu0 0.0
  %1411 = vmatpush1.msra.mxu0 %v1212
  %1412 = vmatprep.subr.mxu0 0.0
  %1413 = vmatpush1.msra.mxu0 %v1211
  %1414 = vmatprep.subr.mxu0 0.0
  %1415 = vmatpush1.msra.mxu0 %v1210
  %1416 = vmatprep.subr.mxu0 0.0
  %1417 = vmatpush1.msra.mxu0 %v1209
  %1418 = vmatprep.subr.mxu0 0.0
  %1419 = vmatpush2.msra.mxu0 %v1240
  %1420 = vmatprep.subr.mxu0 0.0
  %1421 = vmatpush2.msra.mxu0 %v1239
  %1422 = vmatprep.subr.mxu0 0.0
  %1423 = vmatpush2.msra.mxu0 %v1238
  %1424 = vmatprep.subr.mxu0 0.0
  %1425 = vmatpush2.msra.mxu0 %v1237
  %1426 = vmatprep.subr.mxu0 0.0
  %1427 = vmatpush2.msra.mxu0 %v1236
  %1428 = vmatprep.subr.mxu0 0.0
  %1429 = vmatpush2.msra.mxu0 %v1235
  %1430 = vmatprep.subr.mxu0 0.0
  %1431 = vmatpush2.msra.mxu0 %v1234
  %1432 = vmatprep.subr.mxu0 0.0
  %1433 = vmatpush2.msra.mxu0 %v1233
  %1434 = vmatprep.subr.mxu0 0.0
  %1435 = vmatpush2.msra.mxu0 %v1232
  %1436 = vmatprep.subr.mxu0 0.0
  %1437 = vmatpush2.msra.mxu0 %v1231
  %1438 = vmatprep.subr.mxu0 0.0
  %1439 = vmatpush2.msra.mxu0 %v1230
  %1440 = vmatprep.subr.mxu0 0.0
  %1441 = vmatpush2.msra.mxu0 %v1229
  %1442 = vmatprep.subr.mxu0 0.0
  %1443 = vmatpush2.msra.mxu0 %v1228
  %1444 = vmatprep.subr.mxu0 0.0
  %1445 = vmatpush2.msra.mxu0 %v1227
  %1446 = vmatprep.subr.mxu0 0.0
  %1447 = vmatpush2.msra.mxu0 %v1226
  %1448 = vmatprep.subr.mxu0 0.0
  %1449 = vmatpush2.msra.mxu0 %v1225
  %1450 = vmatprep.mubr.f32.mxu0 %v1116
  %1451 = vmatmul.mubr.f32.gmra.mxu0 %v1115
  %v1452 = vpop.f32.mrf.mxu0
  %v1453 = vadd.f32 %v1308, %v1452
  %v1454 = vpop.f32.mrf.mxu0
  %1455 = vmatprep.mubr.f32.mxu0 %v1120
  %1456 = vmatmul.mubr.f32.gmra.mxu0 %v1119
  %v1457 = vpop.f32.mrf.mxu0
  %v1458 = vadd.f32 %v1313, %v1457
  %v1459 = vpop.f32.mrf.mxu0
  %1460 = vmatprep.mubr.f32.mxu0 %v1124
  %1461 = vmatmul.mubr.f32.gmra.mxu0 %v1123
  %v1462 = vpop.f32.mrf.mxu0
  %v1463 = vadd.f32 %v1318, %v1462
  %v1464 = vpop.f32.mrf.mxu0
  %1465 = vmatprep.mubr.f32.mxu0 %v1128
  %1466 = vmatmul.mubr.f32.gmra.mxu0 %v1127
  %v1467 = vpop.f32.mrf.mxu0
  %v1468 = vadd.f32 %v1323, %v1467
  %v1469 = vpop.f32.mrf.mxu0
  %1470 = vmatprep.mubr.f32.mxu0 %v1132
  %1471 = vmatmul.mubr.f32.gmra.mxu0 %v1131
  %v1472 = vpop.f32.mrf.mxu0
  %v1473 = vadd.f32 %v1328, %v1472
  %v1474 = vpop.f32.mrf.mxu0
  %1475 = vmatprep.mubr.f32.mxu0 %v1136
  %1476 = vmatmul.mubr.f32.gmra.mxu0 %v1135
  %v1477 = vpop.f32.mrf.mxu0
  %v1478 = vadd.f32 %v1333, %v1477
  %v1479 = vpop.f32.mrf.mxu0
  %1480 = vmatprep.mubr.f32.mxu0 %v1140
  %1481 = vmatmul.mubr.f32.gmra.mxu0 %v1139
  %v1482 = vpop.f32.mrf.mxu0
  %v1483 = vadd.f32 %v1338, %v1482
  %v1484 = vpop.f32.mrf.mxu0
  %1485 = vmatprep.mubr.f32.mxu0 %v1144
  %1486 = vmatmul.mubr.f32.gmra.mxu0 %v1143
  %v1487 = vpop.f32.mrf.mxu0
  %v1488 = vadd.f32 %v1343, %v1487
  %v1489 = vpop.f32.mrf.mxu0
  %1490 = vmatprep.mubr.f32.mxu0 %v1148
  %1491 = vmatmul.mubr.f32.gmra.mxu0 %v1147
  %v1492 = vpop.f32.mrf.mxu0
  %v1493 = vadd.f32 %v1348, %v1492
  %v1494 = vpop.f32.mrf.mxu0
  %1495 = vmatprep.mubr.f32.mxu0 %v1152
  %1496 = vmatmul.mubr.f32.gmra.mxu0 %v1151
  %v1497 = vpop.f32.mrf.mxu0
  %v1498 = vadd.f32 %v1353, %v1497
  %v1499 = vpop.f32.mrf.mxu0
  %1500 = vmatprep.mubr.f32.mxu0 %v1156
  %1501 = vmatmul.mubr.f32.gmra.mxu0 %v1155
  %v1502 = vpop.f32.mrf.mxu0
  %v1503 = vadd.f32 %v1358, %v1502
  %v1504 = vpop.f32.mrf.mxu0
  %1505 = vmatprep.mubr.f32.mxu0 %v1160
  %1506 = vmatmul.mubr.f32.gmra.mxu0 %v1159
  %v1507 = vpop.f32.mrf.mxu0
  %v1508 = vadd.f32 %v1363, %v1507
  %v1509 = vpop.f32.mrf.mxu0
  %1510 = vmatprep.mubr.f32.mxu0 %v1164
  %1511 = vmatmul.mubr.f32.gmra.mxu0 %v1163
  %v1512 = vpop.f32.mrf.mxu0
  %v1513 = vadd.f32 %v1368, %v1512
  %v1514 = vpop.f32.mrf.mxu0
  %1515 = vmatprep.mubr.f32.mxu0 %v1168
  %1516 = vmatmul.mubr.f32.gmra.mxu0 %v1167
  %v1517 = vpop.f32.mrf.mxu0
  %v1518 = vadd.f32 %v1373, %v1517
  %v1519 = vpop.f32.mrf.mxu0
  %1520 = vmatprep.mubr.f32.mxu0 %v1172
  %1521 = vmatmul.mubr.f32.gmra.mxu0 %v1171
  %v1522 = vpop.f32.mrf.mxu0
  %v1523 = vadd.f32 %v1378, %v1522
  %v1524 = vpop.f32.mrf.mxu0
  %1525 = vmatprep.mubr.f32.mxu0 %v1176
  %1526 = vmatmul.mubr.f32.gmra.mxu0 %v1175
  %v1527 = vpop.f32.mrf.mxu0
  %v1528 = vadd.f32 %v1383, %v1527
  %v1529 = vpop.f32.mrf.mxu0
  %1530 = vdwg.mxu0
  %v1531 = vld [vmem:[%s10] sm:$0xf]
  %v1532 = vld [vmem:[%s11] sm:$0xf]
  %1534 = vset.pattern.permute.xlu0 0
  %1535 = vperm.xlu0 %1534, %v1532
  %v1536 = vpop.permute.xlu0 %1535
  %1538 = vmatprep.subr.mxu0 0.0
  %1539 = vmatpush1.msra.mxu0 %v1528
  %1540 = vmatprep.subr.mxu0 0.0
  %1541 = vmatpush1.msra.mxu0 %v1523
  %1542 = vmatprep.subr.mxu0 0.0
  %1543 = vmatpush1.msra.mxu0 %v1518
  %1544 = vmatprep.subr.mxu0 0.0
  %1545 = vmatpush1.msra.mxu0 %v1513
  %1546 = vmatprep.subr.mxu0 0.0
  %1547 = vmatpush1.msra.mxu0 %v1508
  %1548 = vmatprep.subr.mxu0 0.0
  %1549 = vmatpush1.msra.mxu0 %v1503
  %1550 = vmatprep.subr.mxu0 0.0
  %1551 = vmatpush1.msra.mxu0 %v1498
  %1552 = vmatprep.subr.mxu0 0.0
  %1553 = vmatpush1.msra.mxu0 %v1493
  %1554 = vmatprep.subr.mxu0 0.0
  %1555 = vmatpush1.msra.mxu0 %v1488
  %1556 = vmatprep.subr.mxu0 0.0
  %1557 = vmatpush1.msra.mxu0 %v1483
  %1558 = vmatprep.subr.mxu0 0.0
  %1559 = vmatpush1.msra.mxu0 %v1478
  %1560 = vmatprep.subr.mxu0 0.0
  %1561 = vmatpush1.msra.mxu0 %v1473
  %1562 = vmatprep.subr.mxu0 0.0
  %1563 = vmatpush1.msra.mxu0 %v1468
  %1564 = vmatprep.subr.mxu0 0.0
  %1565 = vmatpush1.msra.mxu0 %v1463
  %1566 = vmatprep.subr.mxu0 0.0
  %1567 = vmatpush1.msra.mxu0 %v1458
  %1568 = vmatprep.subr.mxu0 0.0
  %1569 = vmatpush1.msra.mxu0 %v1453
  %1570 = vmatprep.subr.mxu0 0.0
  %1571 = vmatpush2.msra.mxu0 0.0
  %1572 = vmatprep.subr.mxu0 0.0
  %1573 = vmatpush2.msra.mxu0 0.0
  %1574 = vmatprep.subr.mxu0 0.0
  %1575 = vmatpush2.msra.mxu0 0.0
  %1576 = vmatprep.subr.mxu0 0.0
  %1577 = vmatpush2.msra.mxu0 0.0
  %1578 = vmatprep.subr.mxu0 0.0
  %1579 = vmatpush2.msra.mxu0 0.0
  %1580 = vmatprep.subr.mxu0 0.0
  %1581 = vmatpush2.msra.mxu0 0.0
  %1582 = vmatprep.subr.mxu0 0.0
  %1583 = vmatpush2.msra.mxu0 0.0
  %1584 = vmatprep.subr.mxu0 0.0
  %1585 = vmatpush2.msra.mxu0 0.0
  %1586 = vmatprep.subr.mxu0 0.0
  %1587 = vmatpush2.msra.mxu0 0.0
  %1588 = vmatprep.subr.mxu0 0.0
  %1589 = vmatpush2.msra.mxu0 0.0
  %1590 = vmatprep.subr.mxu0 0.0
  %1591 = vmatpush2.msra.mxu0 0.0
  %1592 = vmatprep.subr.mxu0 0.0
  %1593 = vmatpush2.msra.mxu0 0.0
  %1594 = vmatprep.subr.mxu0 0.0
  %1595 = vmatpush2.msra.mxu0 0.0
  %1596 = vmatprep.subr.mxu0 0.0
  %1597 = vmatpush2.msra.mxu0 0.0
  %1598 = vmatprep.subr.mxu0 0.0
  %1599 = vmatpush2.msra.mxu0 0.0
  %1600 = vmatprep.subr.mxu0 0.0
  %1601 = vmatpush2.msra.mxu0 0.0
  %1602 = vmatprep.mubr.f32.mxu0 0.0
  %1603 = vmatmul.mubr.f32.gmra.mxu0 %v1531
  %v1604 = vpop.f32.mrf.mxu0
  %v1605 = vadd.f32 %v1536, %v1604
  %v1606 = vpop.f32.mrf.mxu0
  %1607 = vdwg.mxu0
  %v1608 = vld [vmem:[%s12] sm:$0xff]
  %v1609 = vld [vmem:[%s12 + $0x8] sm:$0xff]
  %v1610 = vld [vmem:[%s12 + $0x10] sm:$0xff]
  %v1611 = vld [vmem:[%s12 + $0x18] sm:$0xff]
  %v1612 = vld [vmem:[%s2] sm:$0xff]
  %v1613 = vld [vmem:[%s2 + $0x8] sm:$0xff]
  %v1614 = vld [vmem:[%s2 + $0x10] sm:$0x1]
  %v1615 = vld [vmem:[%s13] sm:$0xff]
  %v1616 = vld [vmem:[%s13 + $0x8] sm:$0xff]
  %v1617 = vld [vmem:[%s13 + $0x10] sm:$0xff]
  %v1618 = vld [vmem:[%s13 + $0x18] sm:$0xff]
  %1620 = vset.pattern.permute.xlu0 0
  %1621 = vperm.xlu0 %1620, %v1615
  %v1622 = vpop.permute.xlu0 %1621
  %1625 = vset.pattern.permute.xlu0 0
  %1626 = vperm.xlu0 %1625, %v1616
  %v1627 = vpop.permute.xlu0 %1626
  %1630 = vset.pattern.permute.xlu0 0
  %1631 = vperm.xlu0 %1630, %v1617
  %v1632 = vpop.permute.xlu0 %1631
  %1635 = vset.pattern.permute.xlu0 0
  %1636 = vperm.xlu0 %1635, %v1618
  %v1637 = vpop.permute.xlu0 %1636
  %vm1639 = vcmask 138240
  %v1641 = vsel %vm1639, %v1608, 0
  %v1644 = vsel %vm1639, %v1609, 0
  %v1647 = vsel %vm1639, %v1610, 0
  %v1650 = vsel %vm1639, %v1611, 0
  %v1653 = vsel %vm101, %v1614, 0
  %1655 = vmatprep.subr.mxu0 0.0
  %1656 = vmatpush1.msra.mxu0 0.0
  %1657 = vmatprep.subr.mxu0 0.0
  %1658 = vmatpush1.msra.mxu0 0.0
  %1659 = vmatprep.subr.mxu0 0.0
  %1660 = vmatpush1.msra.mxu0 0.0
  %1661 = vmatprep.subr.mxu0 0.0
  %1662 = vmatpush1.msra.mxu0 0.0
  %1663 = vmatprep.subr.mxu0 0.0
  %1664 = vmatpush1.msra.mxu0 0.0
  %1665 = vmatprep.subr.mxu0 0.0
  %1666 = vmatpush1.msra.mxu0 0.0
  %1667 = vmatprep.subr.mxu0 0.0
  %1668 = vmatpush1.msra.mxu0 0.0
  %1669 = vmatprep.subr.mxu0 0.0
  %1670 = vmatpush1.msra.mxu0 0.0
  %1671 = vmatprep.subr.mxu0 0.0
  %1672 = vmatpush1.msra.mxu0 0.0
  %1673 = vmatprep.subr.mxu0 0.0
  %1674 = vmatpush1.msra.mxu0 0.0
  %1675 = vmatprep.subr.mxu0 0.0
  %1676 = vmatpush1.msra.mxu0 0.0
  %1677 = vmatprep.subr.mxu0 0.0
  %1678 = vmatpush1.msra.mxu0 0.0
  %1679 = vmatprep.subr.mxu0 0.0
  %1680 = vmatpush1.msra.mxu0 0.0
  %1681 = vmatprep.subr.mxu0 0.0
  %1682 = vmatpush1.msra.mxu0 %v1653
  %1683 = vmatprep.subr.mxu0 0.0
  %1684 = vmatpush1.msra.mxu0 %v1613
  %1685 = vmatprep.subr.mxu0 0.0
  %1686 = vmatpush1.msra.mxu0 %v1612
  %1687 = vmatprep.subr.mxu0 0.0
  %1688 = vmatpush2.msra.mxu0 0.0
  %1689 = vmatprep.subr.mxu0 0.0
  %1690 = vmatpush2.msra.mxu0 0.0
  %1691 = vmatprep.subr.mxu0 0.0
  %1692 = vmatpush2.msra.mxu0 0.0
  %1693 = vmatprep.subr.mxu0 0.0
  %1694 = vmatpush2.msra.mxu0 0.0
  %1695 = vmatprep.subr.mxu0 0.0
  %1696 = vmatpush2.msra.mxu0 0.0
  %1697 = vmatprep.subr.mxu0 0.0
  %1698 = vmatpush2.msra.mxu0 0.0
  %1699 = vmatprep.subr.mxu0 0.0
  %1700 = vmatpush2.msra.mxu0 0.0
  %1701 = vmatprep.subr.mxu0 0.0
  %1702 = vmatpush2.msra.mxu0 0.0
  %1703 = vmatprep.subr.mxu0 0.0
  %1704 = vmatpush2.msra.mxu0 0.0
  %1705 = vmatprep.subr.mxu0 0.0
  %1706 = vmatpush2.msra.mxu0 0.0
  %1707 = vmatprep.subr.mxu0 0.0
  %1708 = vmatpush2.msra.mxu0 0.0
  %1709 = vmatprep.subr.mxu0 0.0
  %1710 = vmatpush2.msra.mxu0 0.0
  %1711 = vmatprep.subr.mxu0 0.0
  %1712 = vmatpush2.msra.mxu0 0.0
  %1713 = vmatprep.subr.mxu0 0.0
  %1714 = vmatpush2.msra.mxu0 0.0
  %1715 = vmatprep.subr.mxu0 0.0
  %1716 = vmatpush2.msra.mxu0 0.0
  %1717 = vmatprep.subr.mxu0 0.0
  %1718 = vmatpush2.msra.mxu0 0.0
  %1719 = vmatprep.mubr.f32.mxu0 0.0
  %1720 = vmatmul.mubr.f32.gmra.mxu0 %v1641
  %v1721 = vpop.f32.mrf.mxu0
  %v1722 = vadd.f32 %v1622, %v1721
  %v1723 = vpop.f32.mrf.mxu0
  %1724 = vmatprep.mubr.f32.mxu0 0.0
  %1725 = vmatmul.mubr.f32.gmra.mxu0 %v1644
  %v1726 = vpop.f32.mrf.mxu0
  %v1727 = vadd.f32 %v1627, %v1726
  %v1728 = vpop.f32.mrf.mxu0
  %1729 = vmatprep.mubr.f32.mxu0 0.0
  %1730 = vmatmul.mubr.f32.gmra.mxu0 %v1647
  %v1731 = vpop.f32.mrf.mxu0
  %v1732 = vadd.f32 %v1632, %v1731
  %v1733 = vpop.f32.mrf.mxu0
  %1734 = vmatprep.mubr.f32.mxu0 0.0
  %1735 = vmatmul.mubr.f32.gmra.mxu0 %v1650
  %v1736 = vpop.f32.mrf.mxu0
  %v1737 = vadd.f32 %v1637, %v1736
  %v1738 = vpop.f32.mrf.mxu0
  %1739 = vdwg.mxu0
  %v1740 = vmax.f32 %v1722, 0.0
  %v1741 = vmax.f32 %v1727, 0.0
  %v1742 = vmax.f32 %v1732, 0.0
  %v1743 = vmax.f32 %v1737, 0.0
  %v1744 = vld [vmem:[%s14] sm:$0xff]
  %v1745 = vld [vmem:[%s14 + $0x8] sm:$0xff]
  %v1746 = vld [vmem:[%s15] sm:$0xff]
  %v1747 = vld [vmem:[%s15 + $0x8] sm:$0xff]
  %1749 = vset.pattern.permute.xlu0 0
  %1750 = vperm.xlu0 %1749, %v1746
  %v1751 = vpop.permute.xlu0 %1750
  %1754 = vset.pattern.permute.xlu0 0
  %1755 = vperm.xlu0 %1754, %v1747
  %v1756 = vpop.permute.xlu0 %1755
  %vm1758 = vcmask 261120
  %v1760 = vsel %vm1758, %v1744, 0
  %v1763 = vsel %vm1758, %v1745, 0
  %1765 = vmatprep.subr.mxu0 0.0
  %1766 = vmatpush1.msra.mxu0 0.0
  %1767 = vmatprep.subr.mxu0 0.0
  %1768 = vmatpush1.msra.mxu0 0.0
  %1769 = vmatprep.subr.mxu0 0.0
  %1770 = vmatpush1.msra.mxu0 0.0
  %1771 = vmatprep.subr.mxu0 0.0
  %1772 = vmatpush1.msra.mxu0 0.0
  %1773 = vmatprep.subr.mxu0 0.0
  %1774 = vmatpush1.msra.mxu0 0.0
  %1775 = vmatprep.subr.mxu0 0.0
  %1776 = vmatpush1.msra.mxu0 0.0
  %1777 = vmatprep.subr.mxu0 0.0
  %1778 = vmatpush1.msra.mxu0 0.0
  %1779 = vmatprep.subr.mxu0 0.0
  %1780 = vmatpush1.msra.mxu0 0.0
  %1781 = vmatprep.subr.mxu0 0.0
  %1782 = vmatpush1.msra.mxu0 0.0
  %1783 = vmatprep.subr.mxu0 0.0
  %1784 = vmatpush1.msra.mxu0 0.0
  %1785 = vmatprep.subr.mxu0 0.0
  %1786 = vmatpush1.msra.mxu0 0.0
  %1787 = vmatprep.subr.mxu0 0.0
  %1788 = vmatpush1.msra.mxu0 0.0
  %1789 = vmatprep.subr.mxu0 0.0
  %1790 = vmatpush1.msra.mxu0 %v1743
  %1791 = vmatprep.subr.mxu0 0.0
  %1792 = vmatpush1.msra.mxu0 %v1742
  %1793 = vmatprep.subr.mxu0 0.0
  %1794 = vmatpush1.msra.mxu0 %v1741
  %1795 = vmatprep.subr.mxu0 0.0
  %1796 = vmatpush1.msra.mxu0 %v1740
  %1797 = vmatprep.subr.mxu0 0.0
  %1798 = vmatpush2.msra.mxu0 0.0
  %1799 = vmatprep.subr.mxu0 0.0
  %1800 = vmatpush2.msra.mxu0 0.0
  %1801 = vmatprep.subr.mxu0 0.0
  %1802 = vmatpush2.msra.mxu0 0.0
  %1803 = vmatprep.subr.mxu0 0.0
  %1804 = vmatpush2.msra.mxu0 0.0
  %1805 = vmatprep.subr.mxu0 0.0
  %1806 = vmatpush2.msra.mxu0 0.0
  %1807 = vmatprep.subr.mxu0 0.0
  %1808 = vmatpush2.msra.mxu0 0.0
  %1809 = vmatprep.subr.mxu0 0.0
  %1810 = vmatpush2.msra.mxu0 0.0
  %1811 = vmatprep.subr.mxu0 0.0
  %1812 = vmatpush2.msra.mxu0 0.0
  %1813 = vmatprep.subr.mxu0 0.0
  %1814 = vmatpush2.msra.mxu0 0.0
  %1815 = vmatprep.subr.mxu0 0.0
  %1816 = vmatpush2.msra.mxu0 0.0
  %1817 = vmatprep.subr.mxu0 0.0
  %1818 = vmatpush2.msra.mxu0 0.0
  %1819 = vmatprep.subr.mxu0 0.0
  %1820 = vmatpush2.msra.mxu0 0.0
  %1821 = vmatprep.subr.mxu0 0.0
  %1822 = vmatpush2.msra.mxu0 0.0
  %1823 = vmatprep.subr.mxu0 0.0
  %1824 = vmatpush2.msra.mxu0 0.0
  %1825 = vmatprep.subr.mxu0 0.0
  %1826 = vmatpush2.msra.mxu0 0.0
  %1827 = vmatprep.subr.mxu0 0.0
  %1828 = vmatpush2.msra.mxu0 0.0
  %1829 = vmatprep.mubr.f32.mxu0 0.0
  %1830 = vmatmul.mubr.f32.gmra.mxu0 %v1760
  %v1831 = vpop.f32.mrf.mxu0
  %v1832 = vadd.f32 %v1751, %v1831
  %v1833 = vpop.f32.mrf.mxu0
  %1834 = vmatprep.mubr.f32.mxu0 0.0
  %1835 = vmatmul.mubr.f32.gmra.mxu0 %v1763
  %v1836 = vpop.f32.mrf.mxu0
  %v1837 = vadd.f32 %v1756, %v1836
  %v1838 = vpop.f32.mrf.mxu0
  %1839 = vdwg.mxu0
  %v1840 = vmax.f32 %v1832, 0.0
  %v1841 = vmax.f32 %v1837, 0.0
  %v1842 = vld [vmem:[%s16] sm:$0xf]
  %v1843 = vld [vmem:[%s17] sm:$0xf]
  %1845 = vset.pattern.permute.xlu0 0
  %1846 = vperm.xlu0 %1845, %v1843
  %v1847 = vpop.permute.xlu0 %1846
  %v1850 = vsel %vm862, %v1842, 0
  %1852 = vmatprep.subr.mxu0 0.0
  %1853 = vmatpush1.msra.mxu0 0.0
  %1854 = vmatprep.subr.mxu0 0.0
  %1855 = vmatpush1.msra.mxu0 0.0
  %1856 = vmatprep.subr.mxu0 0.0
  %1857 = vmatpush1.msra.mxu0 0.0
  %1858 = vmatprep.subr.mxu0 0.0
  %1859 = vmatpush1.msra.mxu0 0.0
  %1860 = vmatprep.subr.mxu0 0.0
  %1861 = vmatpush1.msra.mxu0 0.0
  %1862 = vmatprep.subr.mxu0 0.0
  %1863 = vmatpush1.msra.mxu0 0.0
  %1864 = vmatprep.subr.mxu0 0.0
  %1865 = vmatpush1.msra.mxu0 0.0
  %1866 = vmatprep.subr.mxu0 0.0
  %1867 = vmatpush1.msra.mxu0 0.0
  %1868 = vmatprep.subr.mxu0 0.0
  %1869 = vmatpush1.msra.mxu0 0.0
  %1870 = vmatprep.subr.mxu0 0.0
  %1871 = vmatpush1.msra.mxu0 0.0
  %1872 = vmatprep.subr.mxu0 0.0
  %1873 = vmatpush1.msra.mxu0 0.0
  %1874 = vmatprep.subr.mxu0 0.0
  %1875 = vmatpush1.msra.mxu0 0.0
  %1876 = vmatprep.subr.mxu0 0.0
  %1877 = vmatpush1.msra.mxu0 0.0
  %1878 = vmatprep.subr.mxu0 0.0
  %1879 = vmatpush1.msra.mxu0 0.0
  %1880 = vmatprep.subr.mxu0 0.0
  %1881 = vmatpush1.msra.mxu0 %v1841
  %1882 = vmatprep.subr.mxu0 0.0
  %1883 = vmatpush1.msra.mxu0 %v1840
  %1884 = vmatprep.subr.mxu0 0.0
  %1885 = vmatpush2.msra.mxu0 0.0
  %1886 = vmatprep.subr.mxu0 0.0
  %1887 = vmatpush2.msra.mxu0 0.0
  %1888 = vmatprep.subr.mxu0 0.0
  %1889 = vmatpush2.msra.mxu0 0.0
  %1890 = vmatprep.subr.mxu0 0.0
  %1891 = vmatpush2.msra.mxu0 0.0
  %1892 = vmatprep.subr.mxu0 0.0
  %1893 = vmatpush2.msra.mxu0 0.0
  %1894 = vmatprep.subr.mxu0 0.0
  %1895 = vmatpush2.msra.mxu0 0.0
  %1896 = vmatprep.subr.mxu0 0.0
  %1897 = vmatpush2.msra.mxu0 0.0
  %1898 = vmatprep.subr.mxu0 0.0
  %1899 = vmatpush2.msra.mxu0 0.0
  %1900 = vmatprep.subr.mxu0 0.0
  %1901 = vmatpush2.msra.mxu0 0.0
  %1902 = vmatprep.subr.mxu0 0.0
  %1903 = vmatpush2.msra.mxu0 0.0
  %1904 = vmatprep.subr.mxu0 0.0
  %1905 = vmatpush2.msra.mxu0 0.0
  %1906 = vmatprep.subr.mxu0 0.0
  %1907 = vmatpush2.msra.mxu0 0.0
  %1908 = vmatprep.subr.mxu0 0.0
  %1909 = vmatpush2.msra.mxu0 0.0
  %1910 = vmatprep.subr.mxu0 0.0
  %1911 = vmatpush2.msra.mxu0 0.0
  %1912 = vmatprep.subr.mxu0 0.0
  %1913 = vmatpush2.msra.mxu0 0.0
  %1914 = vmatprep.subr.mxu0 0.0
  %1915 = vmatpush2.msra.mxu0 0.0
  %1916 = vmatprep.mubr.f32.mxu0 0.0
  %1917 = vmatmul.mubr.f32.gmra.mxu0 %v1850
  %v1918 = vpop.f32.mrf.mxu0
  %v1919 = vadd.f32 %v1847, %v1918
  %v1920 = vpop.f32.mrf.mxu0
  %1921 = vdwg.mxu0
  %v1922 = vmax.f32 %v1919, 0.0
  %v1923 = vld [vmem:[%s18] sm:$0xf]
  %v1924 = vmax.f32 %v1605, 0.0
  %v1925 = vld [vmem:[%s19] sm:$0xf]
  %v1926 = vmax.f32 %v1922, 0.0
  %vm1927 = vcmask 31744
  %v1929 = vsel %vm1927, %v1925, 0
  %vm1931 = vcmask 1043456
  %v1933 = vsel %vm1931, %v1926, 0
  %1935 = vmatprep.subr.mxu0 0.0
  %1936 = vmatpush1.msra.mxu0 0.0
  %1937 = vmatprep.subr.mxu0 0.0
  %1938 = vmatpush1.msra.mxu0 0.0
  %1939 = vmatprep.subr.mxu0 0.0
  %1940 = vmatpush1.msra.mxu0 0.0
  %1941 = vmatprep.subr.mxu0 0.0
  %1942 = vmatpush1.msra.mxu0 0.0
  %1943 = vmatprep.subr.mxu0 0.0
  %1944 = vmatpush1.msra.mxu0 0.0
  %1945 = vmatprep.subr.mxu0 0.0
  %1946 = vmatpush1.msra.mxu0 0.0
  %1947 = vmatprep.subr.mxu0 0.0
  %1948 = vmatpush1.msra.mxu0 0.0
  %1949 = vmatprep.subr.mxu0 0.0
  %1950 = vmatpush1.msra.mxu0 0.0
  %1951 = vmatprep.subr.mxu0 0.0
  %1952 = vmatpush1.msra.mxu0 0.0
  %1953 = vmatprep.subr.mxu0 0.0
  %1954 = vmatpush1.msra.mxu0 0.0
  %1955 = vmatprep.subr.mxu0 0.0
  %1956 = vmatpush1.msra.mxu0 0.0
  %1957 = vmatprep.subr.mxu0 0.0
  %1958 = vmatpush1.msra.mxu0 0.0
  %1959 = vmatprep.subr.mxu0 0.0
  %1960 = vmatpush1.msra.mxu0 0.0
  %1961 = vmatprep.subr.mxu0 0.0
  %1962 = vmatpush1.msra.mxu0 0.0
  %1963 = vmatprep.subr.mxu0 0.0
  %1964 = vmatpush1.msra.mxu0 0.0
  %1965 = vmatprep.subr.mxu0 0.0
  %1966 = vmatpush1.msra.mxu0 %v1933
  %1967 = vmatprep.subr.mxu0 0.0
  %1968 = vmatpush2.msra.mxu0 0.0
  %1969 = vmatprep.subr.mxu0 0.0
  %1970 = vmatpush2.msra.mxu0 0.0
  %1971 = vmatprep.subr.mxu0 0.0
  %1972 = vmatpush2.msra.mxu0 0.0
  %1973 = vmatprep.subr.mxu0 0.0
  %1974 = vmatpush2.msra.mxu0 0.0
  %1975 = vmatprep.subr.mxu0 0.0
  %1976 = vmatpush2.msra.mxu0 0.0
  %1977 = vmatprep.subr.mxu0 0.0
  %1978 = vmatpush2.msra.mxu0 0.0
  %1979 = vmatprep.subr.mxu0 0.0
  %1980 = vmatpush2.msra.mxu0 0.0
  %1981 = vmatprep.subr.mxu0 0.0
  %1982 = vmatpush2.msra.mxu0 0.0
  %1983 = vmatprep.subr.mxu0 0.0
  %1984 = vmatpush2.msra.mxu0 0.0
  %1985 = vmatprep.subr.mxu0 0.0
  %1986 = vmatpush2.msra.mxu0 0.0
  %1987 = vmatprep.subr.mxu0 0.0
  %1988 = vmatpush2.msra.mxu0 0.0
  %1989 = vmatprep.subr.mxu0 0.0
  %1990 = vmatpush2.msra.mxu0 0.0
  %1991 = vmatprep.subr.mxu0 0.0
  %1992 = vmatpush2.msra.mxu0 0.0
  %1993 = vmatprep.subr.mxu0 0.0
  %1994 = vmatpush2.msra.mxu0 0.0
  %1995 = vmatprep.subr.mxu0 0.0
  %1996 = vmatpush2.msra.mxu0 0.0
  %1997 = vmatprep.subr.mxu0 0.0
  %1998 = vmatpush2.msra.mxu0 0.0
  %1999 = vmatprep.mubr.f32.mxu0 0.0
  %2000 = vmatmul.mubr.f32.gmra.mxu0 %v1929
  %v2001 = vpop.f32.mrf.mxu0
  %v2002 = vadd.f32 0.0, %v2001
  %v2003 = vpop.f32.mrf.mxu0
  %2004 = vdwg.mxu0
  %v2006 = vsel %vm1927, %v1923, 0
  %v2009 = vsel %vm1931, %v1924, 0
  %2011 = vmatprep.subr.mxu0 0.0
  %2012 = vmatpush1.msra.mxu0 0.0
  %2013 = vmatprep.subr.mxu0 0.0
  %2014 = vmatpush1.msra.mxu0 0.0
  %2015 = vmatprep.subr.mxu0 0.0
  %2016 = vmatpush1.msra.mxu0 0.0
  %2017 = vmatprep.subr.mxu0 0.0
  %2018 = vmatpush1.msra.mxu0 0.0
  %2019 = vmatprep.subr.mxu0 0.0
  %2020 = vmatpush1.msra.mxu0 0.0
  %2021 = vmatprep.subr.mxu0 0.0
  %2022 = vmatpush1.msra.mxu0 0.0
  %2023 = vmatprep.subr.mxu0 0.0
  %2024 = vmatpush1.msra.mxu0 0.0
  %2025 = vmatprep.subr.mxu0 0.0
  %2026 = vmatpush1.msra.mxu0 0.0
  %2027 = vmatprep.subr.mxu0 0.0
  %2028 = vmatpush1.msra.mxu0 0.0
  %2029 = vmatprep.subr.mxu0 0.0
  %2030 = vmatpush1.msra.mxu0 0.0
  %2031 = vmatprep.subr.mxu0 0.0
  %2032 = vmatpush1.msra.mxu0 0.0
  %2033 = vmatprep.subr.mxu0 0.0
  %2034 = vmatpush1.msra.mxu0 0.0
  %2035 = vmatprep.subr.mxu0 0.0
  %2036 = vmatpush1.msra.mxu0 0.0
  %2037 = vmatprep.subr.mxu0 0.0
  %2038 = vmatpush1.msra.mxu0 0.0
  %2039 = vmatprep.subr.mxu0 0.0
  %2040 = vmatpush1.msra.mxu0 0.0
  %2041 = vmatprep.subr.mxu0 0.0
  %2042 = vmatpush1.msra.mxu0 %v2009
  %2043 = vmatprep.subr.mxu0 0.0
  %2044 = vmatpush2.msra.mxu0 0.0
  %2045 = vmatprep.subr.mxu0 0.0
  %2046 = vmatpush2.msra.mxu0 0.0
  %2047 = vmatprep.subr.mxu0 0.0
  %2048 = vmatpush2.msra.mxu0 0.0
  %2049 = vmatprep.subr.mxu0 0.0
  %2050 = vmatpush2.msra.mxu0 0.0
  %2051 = vmatprep.subr.mxu0 0.0
  %2052 = vmatpush2.msra.mxu0 0.0
  %2053 = vmatprep.subr.mxu0 0.0
  %2054 = vmatpush2.msra.mxu0 0.0
  %2055 = vmatprep.subr.mxu0 0.0
  %2056 = vmatpush2.msra.mxu0 0.0
  %2057 = vmatprep.subr.mxu0 0.0
  %2058 = vmatpush2.msra.mxu0 0.0
  %2059 = vmatprep.subr.mxu0 0.0
  %2060 = vmatpush2.msra.mxu0 0.0
  %2061 = vmatprep.subr.mxu0 0.0
  %2062 = vmatpush2.msra.mxu0 0.0
  %2063 = vmatprep.subr.mxu0 0.0
  %2064 = vmatpush2.msra.mxu0 0.0
  %2065 = vmatprep.subr.mxu0 0.0
  %2066 = vmatpush2.msra.mxu0 0.0
  %2067 = vmatprep.subr.mxu0 0.0
  %2068 = vmatpush2.msra.mxu0 0.0
  %2069 = vmatprep.subr.mxu0 0.0
  %2070 = vmatpush2.msra.mxu0 0.0
  %2071 = vmatprep.subr.mxu0 0.0
  %2072 = vmatpush2.msra.mxu0 0.0
  %2073 = vmatprep.subr.mxu0 0.0
  %2074 = vmatpush2.msra.mxu0 0.0
  %2075 = vmatprep.mubr.f32.mxu0 0.0
  %2076 = vmatmul.mubr.f32.gmra.mxu0 %v2006
  %v2077 = vpop.f32.mrf.mxu0
  %v2078 = vadd.f32 %v2002, %v2077
  %v2079 = vpop.f32.mrf.mxu0
  %2080 = vdwg.mxu0
  %v2081 = vld [vmem:[%s20] sm:$0xf]
  %2083 = vset.pattern.permute.xlu0 0
  %2084 = vperm.xlu0 %2083, %v2081
  %v2085 = vpop.permute.xlu0 %2084
  %v2087 = vadd.f32 %v2078, %v2085
  %vm2088 = vcmask 11264
  %2089 = vst.msk [vmem:[%s21] sm:$0xf] %vm2088, %v2087
  // Predicated region
  $region86: #{tpu_custom_call.1} parent=0 // pred_check
    _
  $region87: #{tpu_custom_call.1} parent=0 // pred_check_branch
    %2091 = sbr.rel (0) target = $region89
  $region88: #{tpu_custom_call.1} parent=0 // pred_region
    _
  $region89: #{tpu_custom_call.1} parent=0 // pred_fallthru
    _
  // Predicated region
  $region90: #{tpu_custom_call.1} parent=0 // pred_check
    _
  $region91: #{tpu_custom_call.1} parent=0 // pred_check_branch
    %2093 = sbr.rel (0) target = $region93
  $region92: #{tpu_custom_call.1} parent=0 // pred_region
    _
  $region93: #{tpu_custom_call.1} parent=0 // pred_fallthru
    _

</llo_original>
